<compile_context>
chip_gen: v6e
topology: v6e:2x2x1
jax: 0.10.0
libtpu: 0.0.40
codegen_flags: <defaults>
</compile_context>

<pallas_src>
import functools

import jax
import jax.numpy as jnp
import numpy as np
from jax.experimental import pallas as pl
from jax.experimental.pallas import tpu as pltpu

_EPS = 1e-5

_LANES = 128
_SUBLANE_QUANT = 32                       # int8 labels need 32-sublane granularity for sub-blocks
_POS_QUANT = _SUBLANE_QUANT * _LANES      # 4096 positions
# Conservative estimate of per-position bytes of in-kernel f32 working planes (m, s, lse,
# logit_at, xc, x_c, p_c, t_c, validf, int32 labels, fold temporaries, ...).
_WORKING_BYTES_PER_POS = 64

# VMEM accumulator slots
_ACC_CE, _ACC_INTER, _ACC_PSUM, _ACC_TSUM = 0, 1, 2, 3


def _scale_loss_kernel(class_ref, x_ref, y_ref, o_ref, acc_ref, *,
                       n_classes, hw_total, needs_mask):
    """Per-(batch, spatial-tile) partial loss for one deep-supervision scale.

    class_ref : SMEM (B,) int32            scalar-prefetched class index per batch element
                                           (must satisfy 0 <= class < C, as in nnUNet)
    x_ref     : VMEM (1, C, S_tile, 128)   logits (native dtype, f32 math in-kernel)
    y_ref     : VMEM (1, 1, S_tile, 128)   labels (int8, widened in-kernel; -1 marks padding)
    o_ref     : VMEM (1, 1, 128) f32       per-batch scalar loss, written on the last tile
    acc_ref   : VMEM (4, 8, 128) f32       vector accumulators across spatial tiles
    """
    b = pl.program_id(0)
    hw = pl.program_id(1)
    n_hw = pl.num_programs(1)

    # NOTE: the accumulator pattern relies on `hw` being the innermost grid axis (reset at
    # hw == 0, consumed at hw == n_hw - 1) and on VMEM scratch being per-core.
    @pl.when(hw == 0)
    def _init():
        acc_ref[...] = jnp.zeros_like(acc_ref)

    c_sel = class_ref[b]
    labels = y_ref[0, 0].astype(jnp.int32)                    # (S, 128)

    # Pass 1: per-position max over the (small, static) class axis — packed VALU maxes over
    # (S,128) planes; no (C,S,128) temporary is materialized.
    m = x_ref[0, 0].astype(jnp.float32)
    for c in range(1, n_classes):
        m = jnp.maximum(m, x_ref[0, c].astype(jnp.float32))

    # Pass 2: softmax denominator and the logit at the label position (one-hot gather fused
    # into the same unrolled class loop).
    s = jnp.zeros_like(m)
    logit_at = jnp.zeros_like(m)
    for c in range(n_classes):
        xc = x_ref[0, c].astype(jnp.float32)
        s = s + jnp.exp(xc - m)
        logit_at = logit_at + jnp.where(labels == c, xc, 0.0)

    lse = m + jnp.log(s)                                      # (S, 128)

    # Soft-Dice pieces for the selected class only: direct dynamic row pick from the ref
    # (no (C,·) one-hot mask slab); EUP approx reciprocal for the softmax denominator.
    x_c = x_ref[0, c_sel].astype(jnp.float32)                 # (S, 128)
    p_c = jnp.exp(x_c - m) * pl.reciprocal(s, approx=True)
    t_c = (labels == c_sel).astype(jnp.float32)               # pad labels (-1) never match

    if needs_mask:
        validf = (labels >= 0).astype(jnp.float32)            # wrapper pads labels with -1
        lse = lse * validf
        p_c = p_c * validf
        # logit_at / t_c are already 0 on padded positions (label -1 matches no class >= 0)

    S = lse.shape[0]

    def fold(v):
        # (S, 128) -> (8, 128) via a cross-vreg sublane-group sum (pure VALU, no XLU).
        return jnp.sum(v.reshape(S // 8, 8, _LANES), axis=0)

    acc_ref[_ACC_CE] = acc_ref[_ACC_CE] + fold(lse - logit_at)
    acc_ref[_ACC_INTER] = acc_ref[_ACC_INTER] + fold(p_c * t_c)
    acc_ref[_ACC_PSUM] = acc_ref[_ACC_PSUM] + fold(p_c)
    acc_ref[_ACC_TSUM] = acc_ref[_ACC_TSUM] + fold(t_c)

    @pl.when(hw == n_hw - 1)
    def _finalize():
        # One full (XLU) reduce per accumulator per batch element — off the hot path.
        ce = jnp.sum(acc_ref[_ACC_CE]) / jnp.float32(hw_total)
        inter = jnp.sum(acc_ref[_ACC_INTER])
        denom = jnp.sum(acc_ref[_ACC_PSUM]) + jnp.sum(acc_ref[_ACC_TSUM])
        dice = 1.0 - (2.0 * inter + _EPS) / (denom + _EPS)
        o_ref[...] = jnp.full(o_ref.shape, ce + dice, dtype=o_ref.dtype)


def _vmem_capacity_bytes():
    try:
        return int(pltpu.get_tpu_info().vmem_capacity_bytes)
    except Exception:
        return 64 * 1024 * 1024            # conservative fallback (v7x per-TensorCore VMEM)


def _choose_tile_sublanes(S, C, x_itemsize, y_itemsize, budget_bytes, tile_positions=None):
    """Largest multiple-of-32 divisor of S whose pipelined blocks + working set fit the budget."""
    assert S % _SUBLANE_QUANT == 0
    k = S // _SUBLANE_QUANT
    per_unit = _POS_QUANT * (2 * (C * x_itemsize + y_itemsize) + _WORKING_BYTES_PER_POS)
    if tile_positions is not None:
        want = int(tile_positions) // _POS_QUANT
    else:
        want = int(budget_bytes) // per_unit
    want = max(1, min(k, want))
    d = want
    while k % d:                           # shrink to an exact divisor of S/32
        d -= 1
    return d * _SUBLANE_QUANT


def _per_scale_per_batch_loss_pallas(x, y, class_for_batch, *, tile_positions=None):
    """x: (B, C, *spatial) logits (native dtype); y: (B, 1, *spatial) int labels -> (B,) f32."""
    B, C = int(x.shape[0]), int(x.shape[1])
    HW = int(np.prod(x.shape[2:]))
    HW_pad = ((HW + _POS_QUANT - 1) // _POS_QUANT) * _POS_QUANT
    S = HW_pad // _LANES

    x2 = x.reshape(B, C, HW)               # native dtype: no f32 HBM copy
    y2 = y.reshape(B, 1, HW)
    if not jnp.issubdtype(y2.dtype, jnp.integer):
        y2 = y2.astype(jnp.int32)

    pad = HW_pad - HW
    needs_mask = pad != 0
    if needs_mask:
        # NOTE: padding materializes one extra copy; typical nnUNet head sizes (products of
        # pooled spatial extents) are already multiples of 4096 and skip this entirely.
        x2 = jnp.pad(x2, ((0, 0), (0, 0), (0, pad)))
        y2 = jnp.pad(y2, ((0, 0), (0, 0), (0, pad)), constant_values=-1)

    x4 = x2.reshape(B, C, S, _LANES)        # contiguous -> free reshape, lane-dense layout
    y4 = y2.reshape(B, 1, S, _LANES)

    vmem_cap = _vmem_capacity_bytes()
    vmem_limit = max((vmem_cap * 3) // 4, 32 * 1024 * 1024)   # ~48 MiB v7x, ~96 MiB v5e/v6e
    budget = vmem_limit - 4 * 1024 * 1024                     # headroom: output, scratch, sems
    s_tile = _choose_tile_sublanes(S, C, x4.dtype.itemsize, y4.dtype.itemsize,
                                   budget, tile_positions)
    n_hw = S // s_tile                      # exact by construction (s_tile divides S)

    kernel = functools.partial(_scale_loss_kernel, n_classes=C, hw_total=HW,
                               needs_mask=needs_mask)

    out = pl.pallas_call(
        kernel,
        out_shape=jax.ShapeDtypeStruct((B, 1, _LANES), jnp.float32),
        grid_spec=pltpu.PrefetchScalarGridSpec(
            num_scalar_prefetch=1,
            # The spatial reduction axis (hw) must stay innermost for the accumulator pattern.
            grid=(B, n_hw),
            in_specs=[
                pl.BlockSpec((1, C, s_tile, _LANES), lambda b, hw, cls: (b, 0, hw, 0)),
                pl.BlockSpec((1, 1, s_tile, _LANES), lambda b, hw, cls: (b, 0, hw, 0)),
            ],
            out_specs=pl.BlockSpec((1, 1, _LANES), lambda b, hw, cls: (b, 0, 0)),
            scratch_shapes=[pltpu.VMEM((4, 8, _LANES), jnp.float32)],
        ),
        compiler_params=pltpu.CompilerParams(
            dimension_semantics=("parallel", "arbitrary"),
            vmem_limit_bytes=int(vmem_limit),
        ),
    )(class_for_batch.astype(jnp.int32), x4, y4)
    return out[:, 0, 0]


def _per_scale_per_batch_loss_jnp(x, y, class_for_batch):
    """Plain-XLA path for tiny deep-supervision heads (a pallas_call launch costs more than
    the work they contain). Returns per-batch loss, shape (B,)."""
    B, C = int(x.shape[0]), int(x.shape[1])
    HW = int(np.prod(x.shape[2:]))
    xf = x.reshape(B, C, HW).astype(jnp.float32)
    yf = y.reshape(B, HW).astype(jnp.int32)

    def one(xb, yb, cb):
        m = jnp.max(xb, axis=0)
        e = jnp.exp(xb - m[None])
        s = jnp.sum(e, axis=0)
        lse = m + jnp.log(s)
        logit_at = jnp.take_along_axis(xb, yb[None], axis=0)[0]
        ce = jnp.sum(lse - logit_at) / HW
        p_c = e[cb] / s
        t_c = (yb == cb).astype(jnp.float32)
        inter = jnp.sum(p_c * t_c)
        denom = jnp.sum(p_c) + jnp.sum(t_c)
        dice = 1.0 - (2.0 * inter + _EPS) / (denom + _EPS)
        return ce + dice

    return jax.vmap(one)(xf, yf, class_for_batch.astype(jnp.int32))


def multiple_output_loss2_ms(xs, ys, class_for_batch=None, weight_factors=None,
                             tile_positions=None, pallas_min_hw=4096):
    """JAX/Pallas equivalent of MultipleOutputLoss2_MS.forward."""
    assert isinstance(xs, (tuple, list)), "x must be either tuple or list"
    assert isinstance(ys, (tuple, list)), "y must be either tuple or list"
    weights = [1.0] * len(xs) if weight_factors is None else list(weight_factors)
    B = xs[0].shape[0]
    if class_for_batch is None:
        class_for_batch = jnp.arange(B, dtype=jnp.int32)       # PyTorch default arange(10)[b]
    cls = jnp.asarray(class_for_batch).astype(jnp.int32)

    def per_scale(x, y):
        HW = int(np.prod(x.shape[2:]))
        if HW < pallas_min_hw:
            return _per_scale_per_batch_loss_jnp(x, y, cls)
        return _per_scale_per_batch_loss_pallas(x, y, cls, tile_positions=tile_positions)

    # i == 0 is always included (matches the PyTorch code); others skipped if weight == 0.
    total = weights[0] * jnp.sum(per_scale(xs[0], ys[0]))
    for i in range(1, len(weights)):
        if weights[i] != 0:
            total = total + weights[i] * jnp.sum(per_scale(xs[i], ys[i]))
    return total / B


# ----------------------------- pure-JAX reference -----------------------------
def _ref_inner_loss(x, y, c):
    # x: (C, HW), y: (HW,) int, c: scalar int
    logp = jax.nn.log_softmax(x, axis=0)
    p = jnp.exp(logp)
    HW = x.shape[1]
    onehot = jax.nn.one_hot(y, x.shape[0], axis=0, dtype=jnp.float32)
    ce = -jnp.sum(onehot * logp) / HW
    p_c = p[c]
    t_c = (y == c).astype(jnp.float32)
    inter = jnp.sum(p_c * t_c)
    denom = jnp.sum(p_c) + jnp.sum(t_c)
    dice = 1.0 - (2.0 * inter + _EPS) / (denom + _EPS)
    return ce + dice


def _ref_loss(xs, ys, class_for_batch, weight_factors=None):
    weights = [1.0] * len(xs) if weight_factors is None else list(weight_factors)
    B = xs[0].shape[0]
    L = 0.0
    for b in range(B):
        l = weights[0] * _ref_inner_loss(
            xs[0][b].reshape(xs[0].shape[1], -1).astype(jnp.float32),
            ys[0][b].reshape(-1),
            class_for_batch[b],
        )
        for i in range(1, len(weights)):
            if weights[i] != 0:
                l += weights[i] * _ref_inner_loss(
                    xs[i][b].reshape(xs[i].shape[1], -1).astype(jnp.float32),
                    ys[i][b].reshape(-1),
                    class_for_batch[b],
                )
        L += l
    return L / B


if __name__ == "__main__":
    key = jax.random.PRNGKey(0)
    B, C = 2, 4
    # Deep-supervision heads: two big enough for the Pallas path (96x96 exercises the padded /
    # masked tail, 64x64 is an exact 4096-position tile), plus tiny heads that default to the
    # plain-jnp fast path; the last head has weight 0 and is skipped (as in the PyTorch code).
    scales = [(96, 96), (64, 64), (16, 16), (8, 8), (4, 4)]
    weight_factors = [1.0, 0.5, 0.25, 0.125, 0.0]

    xs, ys = [], []
    for (H, W) in scales:
        key, k1, k2 = jax.random.split(key, 3)
        xs.append(jax.random.normal(k1, (B, C, H, W), dtype=jnp.float32))
        labels = jax.random.randint(k2, (B, 1, H, W), 0, C, dtype=jnp.int32)
        ys.append(labels.astype(jnp.int8))  # nnUNet label maps fit in int8 -> 4x less DMA

    # default in PyTorch is torch.arange(10)[batch] -> class index == batch index
    class_for_batch = jnp.arange(B, dtype=jnp.int32)

    ref = _ref_loss(xs, ys, class_for_batch, weight_factors)

    # Tolerance covers the EUP approx-reciprocal softmax denominator (~2^-12 rel-err).
    # 1) Default config: large heads via Pallas (auto tile = full extent), tiny heads via jnp.
    out = multiple_output_loss2_ms(xs, ys, class_for_batch, weight_factors)
    out = jax.block_until_ready(out)
    np.testing.assert_allclose(np.asarray(out), np.asarray(ref), rtol=2e-3, atol=1e-4)

    # 2) Everything through Pallas with forced 4096-position tiles: exercises multi-tile VMEM
    #    accumulation (96x96 -> 3 tiles) and the label-masked padded tail on several heads.
    out2 = multiple_output_loss2_ms(
        xs, ys, class_for_batch, weight_factors, tile_positions=4096, pallas_min_hw=0
    )
    out2 = jax.block_until_ready(out2)
    np.testing.assert_allclose(np.asarray(out2), np.asarray(ref), rtol=2e-3, atol=1e-4)

    print("KERNEL_OK")
</pallas_src>

<mosaic_0001>
module attributes {stable_mosaic.version = 11 : i64} {
  func.func @_scale_loss_kernel(%arg0: i32, %arg1: i32, %arg2: memref<2xi32, #tpu.memory_space<smem>>, %arg3: memref<1x4x96x128xf32, #tpu.memory_space<vmem>>, %arg4: memref<1x1x96x128xi8, #tpu.memory_space<vmem>>, %arg5: memref<1x1x128xf32, #tpu.memory_space<vmem>>, %arg6: memref<4x8x128xf32, #tpu.memory_space<vmem>>) attributes {dimension_semantics = [#tpu.dimension_semantics<parallel>, #tpu.dimension_semantics<arbitrary>], iteration_bounds = array<i64: 2, 1>, scalar_prefetch = 1 : i64, scratch_operands = 1 : i64, tpu.core_type = #tpu.core_type<tc>, window_params = [{transform_indices = @transform_0, window_bounds = array<i64: 1, 4, 96, 128>}, {transform_indices = @transform_1, window_bounds = array<i64: 1, 1, 96, 128>}, {transform_indices = @transform_2, window_bounds = array<i64: 1, 1, 128>}]} {
    %c0_i32 = arith.constant 0 : i32
    %0 = arith.cmpi eq, %arg1, %c0_i32 : i32
    %1 = arith.extui %0 : i1 to i32
    %c0_i32_0 = arith.constant 0 : i32
    %2 = arith.cmpi ne, %1, %c0_i32_0 : i32
    scf.if %2 {
      %cst_73 = arith.constant 0.000000e+00 : f32
      %117 = vector.broadcast %cst_73 : f32 to vector<4x8x128xf32>
      %c0_74 = arith.constant 0 : index
      %c0_75 = arith.constant 0 : index
      %c0_76 = arith.constant 0 : index
      %118 = vector.load %arg6[%c0_74, %c0_75, %c0_76] : memref<4x8x128xf32, #tpu.memory_space<vmem>>, vector<4x8x128xf32>
      tpu.vector_store %arg6[%c0_74, %c0_75, %c0_76], %117 {strides = array<i32>} : memref<4x8x128xf32, #tpu.memory_space<vmem>>, vector<4x8x128xf32>,
    } else {
    }
    %3 = arith.index_cast %arg0 : i32 to index
    %4 = memref.load %arg2[%3] : memref<2xi32, #tpu.memory_space<smem>>
    %c0 = arith.constant 0 : index
    %c0_1 = arith.constant 0 : index
    %c0_2 = arith.constant 0 : index
    %c0_3 = arith.constant 0 : index
    %5 = vector.load %arg4[%c0, %c0_1, %c0_2, %c0_3] : memref<1x1x96x128xi8, #tpu.memory_space<vmem>>, vector<1x1x96x128xi8>
    %6 = vector.shape_cast %5 : vector<1x1x96x128xi8> to vector<96x128xi8>
    %7 = arith.extsi %6 : vector<96x128xi8> to vector<96x128xi32>
    %c0_4 = arith.constant 0 : index
    %c0_5 = arith.constant 0 : index
    %c0_6 = arith.constant 0 : index
    %c0_7 = arith.constant 0 : index
    %8 = vector.load %arg3[%c0_4, %c0_5, %c0_6, %c0_7] : memref<1x4x96x128xf32, #tpu.memory_space<vmem>>, vector<1x1x96x128xf32>
    %9 = vector.shape_cast %8 : vector<1x1x96x128xf32> to vector<96x128xf32>
    %c0_8 = arith.constant 0 : index
    %c1 = arith.constant 1 : index
    %c0_9 = arith.constant 0 : index
    %c0_10 = arith.constant 0 : index
    %10 = vector.load %arg3[%c0_8, %c1, %c0_9, %c0_10] : memref<1x4x96x128xf32, #tpu.memory_space<vmem>>, vector<1x1x96x128xf32>
    %11 = vector.shape_cast %10 : vector<1x1x96x128xf32> to vector<96x128xf32>
    %12 = arith.maximumf %9, %11 : vector<96x128xf32>
    %c0_11 = arith.constant 0 : index
    %c2 = arith.constant 2 : index
    %c0_12 = arith.constant 0 : index
    %c0_13 = arith.constant 0 : index
    %13 = vector.load %arg3[%c0_11, %c2, %c0_12, %c0_13] : memref<1x4x96x128xf32, #tpu.memory_space<vmem>>, vector<1x1x96x128xf32>
    %14 = vector.shape_cast %13 : vector<1x1x96x128xf32> to vector<96x128xf32>
    %15 = arith.maximumf %12, %14 : vector<96x128xf32>
    %c0_14 = arith.constant 0 : index
    %c3 = arith.constant 3 : index
    %c0_15 = arith.constant 0 : index
    %c0_16 = arith.constant 0 : index
    %16 = vector.load %arg3[%c0_14, %c3, %c0_15, %c0_16] : memref<1x4x96x128xf32, #tpu.memory_space<vmem>>, vector<1x1x96x128xf32>
    %17 = vector.shape_cast %16 : vector<1x1x96x128xf32> to vector<96x128xf32>
    %18 = arith.maximumf %15, %17 : vector<96x128xf32>
    %cst = arith.constant 0.000000e+00 : f32
    %19 = vector.broadcast %cst : f32 to vector<96x128xf32>
    %cst_17 = arith.constant 0.000000e+00 : f32
    %20 = vector.broadcast %cst_17 : f32 to vector<96x128xf32>
    %c0_18 = arith.constant 0 : index
    %c0_19 = arith.constant 0 : index
    %c0_20 = arith.constant 0 : index
    %c0_21 = arith.constant 0 : index
    %21 = vector.load %arg3[%c0_18, %c0_19, %c0_20, %c0_21] : memref<1x4x96x128xf32, #tpu.memory_space<vmem>>, vector<1x1x96x128xf32>
    %22 = vector.shape_cast %21 : vector<1x1x96x128xf32> to vector<96x128xf32>
    %23 = arith.subf %22, %18 : vector<96x128xf32>
    %24 = math.exp %23 : vector<96x128xf32>
    %25 = arith.addf %19, %24 : vector<96x128xf32>
    %c0_i32_22 = arith.constant 0 : i32
    %26 = vector.broadcast %c0_i32_22 : i32 to vector<96x128xi32>
    %27 = arith.cmpi eq, %7, %26 : vector<96x128xi32>
    %cst_23 = arith.constant 0.000000e+00 : f32
    %28 = vector.broadcast %cst_23 : f32 to vector<96x128xf32>
    %29 = arith.select %27, %22, %28 : vector<96x128xi1>, vector<96x128xf32>
    %30 = arith.addf %20, %29 : vector<96x128xf32>
    %c0_24 = arith.constant 0 : index
    %c1_25 = arith.constant 1 : index
    %c0_26 = arith.constant 0 : index
    %c0_27 = arith.constant 0 : index
    %31 = vector.load %arg3[%c0_24, %c1_25, %c0_26, %c0_27] : memref<1x4x96x128xf32, #tpu.memory_space<vmem>>, vector<1x1x96x128xf32>
    %32 = vector.shape_cast %31 : vector<1x1x96x128xf32> to vector<96x128xf32>
    %33 = arith.subf %32, %18 : vector<96x128xf32>
    %34 = math.exp %33 : vector<96x128xf32>
    %35 = arith.addf %25, %34 : vector<96x128xf32>
    %c1_i32 = arith.constant 1 : i32
    %36 = vector.broadcast %c1_i32 : i32 to vector<96x128xi32>
    %37 = arith.cmpi eq, %7, %36 : vector<96x128xi32>
    %cst_28 = arith.constant 0.000000e+00 : f32
    %38 = vector.broadcast %cst_28 : f32 to vector<96x128xf32>
    %39 = arith.select %37, %32, %38 : vector<96x128xi1>, vector<96x128xf32>
    %40 = arith.addf %30, %39 : vector<96x128xf32>
    %c0_29 = arith.constant 0 : index
    %c2_30 = arith.constant 2 : index
    %c0_31 = arith.constant 0 : index
    %c0_32 = arith.constant 0 : index
    %41 = vector.load %arg3[%c0_29, %c2_30, %c0_31, %c0_32] : memref<1x4x96x128xf32, #tpu.memory_space<vmem>>, vector<1x1x96x128xf32>
    %42 = vector.shape_cast %41 : vector<1x1x96x128xf32> to vector<96x128xf32>
    %43 = arith.subf %42, %18 : vector<96x128xf32>
    %44 = math.exp %43 : vector<96x128xf32>
    %45 = arith.addf %35, %44 : vector<96x128xf32>
    %c2_i32 = arith.constant 2 : i32
    %46 = vector.broadcast %c2_i32 : i32 to vector<96x128xi32>
    %47 = arith.cmpi eq, %7, %46 : vector<96x128xi32>
    %cst_33 = arith.constant 0.000000e+00 : f32
    %48 = vector.broadcast %cst_33 : f32 to vector<96x128xf32>
    %49 = arith.select %47, %42, %48 : vector<96x128xi1>, vector<96x128xf32>
    %50 = arith.addf %40, %49 : vector<96x128xf32>
    %c0_34 = arith.constant 0 : index
    %c3_35 = arith.constant 3 : index
    %c0_36 = arith.constant 0 : index
    %c0_37 = arith.constant 0 : index
    %51 = vector.load %arg3[%c0_34, %c3_35, %c0_36, %c0_37] : memref<1x4x96x128xf32, #tpu.memory_space<vmem>>, vector<1x1x96x128xf32>
    %52 = vector.shape_cast %51 : vector<1x1x96x128xf32> to vector<96x128xf32>
    %53 = arith.subf %52, %18 : vector<96x128xf32>
    %54 = math.exp %53 : vector<96x128xf32>
    %55 = arith.addf %45, %54 : vector<96x128xf32>
    %c3_i32 = arith.constant 3 : i32
    %56 = vector.broadcast %c3_i32 : i32 to vector<96x128xi32>
    %57 = arith.cmpi eq, %7, %56 : vector<96x128xi32>
    %cst_38 = arith.constant 0.000000e+00 : f32
    %58 = vector.broadcast %cst_38 : f32 to vector<96x128xf32>
    %59 = arith.select %57, %52, %58 : vector<96x128xi1>, vector<96x128xf32>
    %60 = arith.addf %50, %59 : vector<96x128xf32>
    %61 = math.log %55 : vector<96x128xf32>
    %62 = arith.addf %18, %61 : vector<96x128xf32>
    %c0_39 = arith.constant 0 : index
    %63 = arith.index_cast %4 : i32 to index
    %c0_40 = arith.constant 0 : index
    %c0_41 = arith.constant 0 : index
    %64 = vector.load %arg3[%c0_39, %63, %c0_40, %c0_41] : memref<1x4x96x128xf32, #tpu.memory_space<vmem>>, vector<1x1x96x128xf32>
    %65 = vector.shape_cast %64 : vector<1x1x96x128xf32> to vector<96x128xf32>
    %66 = arith.subf %65, %18 : vector<96x128xf32>
    %67 = math.exp %66 : vector<96x128xf32>
    %68 = tpu.reciprocal %55 {approx = true} : vector<96x128xf32> -> vector<96x128xf32>
    %69 = arith.mulf %67, %68 : vector<96x128xf32>
    %70 = vector.broadcast %4 : i32 to vector<96x128xi32>
    %71 = arith.cmpi eq, %7, %70 : vector<96x128xi32>
    %72 = arith.extui %71 : vector<96x128xi1> to vector<96x128xi32>
    %73 = arith.sitofp %72 : vector<96x128xi32> to vector<96x128xf32>
    %c0_i32_42 = arith.constant 0 : i32
    %74 = vector.broadcast %c0_i32_42 : i32 to vector<96x128xi32>
    %75 = arith.cmpi sge, %7, %74 : vector<96x128xi32>
    %76 = arith.extui %75 : vector<96x128xi1> to vector<96x128xi32>
    %77 = arith.sitofp %76 : vector<96x128xi32> to vector<96x128xf32>
    %78 = arith.mulf %62, %77 : vector<96x128xf32>
    %79 = arith.mulf %69, %77 : vector<96x128xf32>
    %c0_43 = arith.constant 0 : index
    %c0_44 = arith.constant 0 : index
    %c0_45 = arith.constant 0 : index
    %80 = vector.load %arg6[%c0_43, %c0_44, %c0_45] : memref<4x8x128xf32, #tpu.memory_space<vmem>>, vector<1x8x128xf32>
    %81 = vector.shape_cast %80 : vector<1x8x128xf32> to vector<8x128xf32>
    %82 = arith.subf %78, %60 : vector<96x128xf32>
    %83 = vector.shape_cast %82 : vector<96x128xf32> to vector<12x8x128xf32>
    %cst_46 = arith.constant dense<0.000000e+00> : vector<8x128xf32>
    %84 = vector.multi_reduction <add>, %83, %cst_46 [0] : vector<12x8x128xf32> to vector<8x128xf32>
    %85 = arith.addf %81, %84 : vector<8x128xf32>
    %c0_47 = arith.constant 0 : index
    %c0_48 = arith.constant 0 : index
    %c0_49 = arith.constant 0 : index
    %86 = vector.load %arg6[%c0_47, %c0_48, %c0_49] : memref<4x8x128xf32, #tpu.memory_space<vmem>>, vector<1x8x128xf32>
    %87 = vector.shape_cast %86 : vector<1x8x128xf32> to vector<8x128xf32>
    %88 = vector.shape_cast %85 : vector<8x128xf32> to vector<1x8x128xf32>
    tpu.vector_store %arg6[%c0_47, %c0_48, %c0_49], %88 {strides = array<i32>} : memref<4x8x128xf32, #tpu.memory_space<vmem>>, vector<1x8x128xf32>,
    %c1_50 = arith.constant 1 : index
    %c0_51 = arith.constant 0 : index
    %c0_52 = arith.constant 0 : index
    %89 = vector.load %arg6[%c1_50, %c0_51, %c0_52] : memref<4x8x128xf32, #tpu.memory_space<vmem>>, vector<1x8x128xf32>
    %90 = vector.shape_cast %89 : vector<1x8x128xf32> to vector<8x128xf32>
    %91 = arith.mulf %79, %73 : vector<96x128xf32>
    %92 = vector.shape_cast %91 : vector<96x128xf32> to vector<12x8x128xf32>
    %cst_53 = arith.constant dense<0.000000e+00> : vector<8x128xf32>
    %93 = vector.multi_reduction <add>, %92, %cst_53 [0] : vector<12x8x128xf32> to vector<8x128xf32>
    %94 = arith.addf %90, %93 : vector<8x128xf32>
    %c1_54 = arith.constant 1 : index
    %c0_55 = arith.constant 0 : index
    %c0_56 = arith.constant 0 : index
    %95 = vector.load %arg6[%c1_54, %c0_55, %c0_56] : memref<4x8x128xf32, #tpu.memory_space<vmem>>, vector<1x8x128xf32>
    %96 = vector.shape_cast %95 : vector<1x8x128xf32> to vector<8x128xf32>
    %97 = vector.shape_cast %94 : vector<8x128xf32> to vector<1x8x128xf32>
    tpu.vector_store %arg6[%c1_54, %c0_55, %c0_56], %97 {strides = array<i32>} : memref<4x8x128xf32, #tpu.memory_space<vmem>>, vector<1x8x128xf32>,
    %c2_57 = arith.constant 2 : index
    %c0_58 = arith.constant 0 : index
    %c0_59 = arith.constant 0 : index
    %98 = vector.load %arg6[%c2_57, %c0_58, %c0_59] : memref<4x8x128xf32, #tpu.memory_space<vmem>>, vector<1x8x128xf32>
    %99 = vector.shape_cast %98 : vector<1x8x128xf32> to vector<8x128xf32>
    %100 = vector.shape_cast %79 : vector<96x128xf32> to vector<12x8x128xf32>
    %cst_60 = arith.constant dense<0.000000e+00> : vector<8x128xf32>
    %101 = vector.multi_reduction <add>, %100, %cst_60 [0] : vector<12x8x128xf32> to vector<8x128xf32>
    %102 = arith.addf %99, %101 : vector<8x128xf32>
    %c2_61 = arith.constant 2 : index
    %c0_62 = arith.constant 0 : index
    %c0_63 = arith.constant 0 : index
    %103 = vector.load %arg6[%c2_61, %c0_62, %c0_63] : memref<4x8x128xf32, #tpu.memory_space<vmem>>, vector<1x8x128xf32>
    %104 = vector.shape_cast %103 : vector<1x8x128xf32> to vector<8x128xf32>
    %105 = vector.shape_cast %102 : vector<8x128xf32> to vector<1x8x128xf32>
    tpu.vector_store %arg6[%c2_61, %c0_62, %c0_63], %105 {strides = array<i32>} : memref<4x8x128xf32, #tpu.memory_space<vmem>>, vector<1x8x128xf32>,
    %c3_64 = arith.constant 3 : index
    %c0_65 = arith.constant 0 : index
    %c0_66 = arith.constant 0 : index
    %106 = vector.load %arg6[%c3_64, %c0_65, %c0_66] : memref<4x8x128xf32, #tpu.memory_space<vmem>>, vector<1x8x128xf32>
    %107 = vector.shape_cast %106 : vector<1x8x128xf32> to vector<8x128xf32>
    %108 = vector.shape_cast %73 : vector<96x128xf32> to vector<12x8x128xf32>
    %cst_67 = arith.constant dense<0.000000e+00> : vector<8x128xf32>
    %109 = vector.multi_reduction <add>, %108, %cst_67 [0] : vector<12x8x128xf32> to vector<8x128xf32>
    %110 = arith.addf %107, %109 : vector<8x128xf32>
    %c3_68 = arith.constant 3 : index
    %c0_69 = arith.constant 0 : index
    %c0_70 = arith.constant 0 : index
    %111 = vector.load %arg6[%c3_68, %c0_69, %c0_70] : memref<4x8x128xf32, #tpu.memory_space<vmem>>, vector<1x8x128xf32>
    %112 = vector.shape_cast %111 : vector<1x8x128xf32> to vector<8x128xf32>
    %113 = vector.shape_cast %110 : vector<8x128xf32> to vector<1x8x128xf32>
    tpu.vector_store %arg6[%c3_68, %c0_69, %c0_70], %113 {strides = array<i32>} : memref<4x8x128xf32, #tpu.memory_space<vmem>>, vector<1x8x128xf32>,
    %c0_i32_71 = arith.constant 0 : i32
    %114 = arith.cmpi eq, %arg1, %c0_i32_71 : i32
    %115 = arith.extui %114 : i1 to i32
    %c0_i32_72 = arith.constant 0 : i32
    %116 = arith.cmpi ne, %115, %c0_i32_72 : i32
    scf.if %116 {
      %c0_73 = arith.constant 0 : index
      %c0_74 = arith.constant 0 : index
      %c0_75 = arith.constant 0 : index
      %117 = vector.load %arg6[%c0_73, %c0_74, %c0_75] : memref<4x8x128xf32, #tpu.memory_space<vmem>>, vector<1x8x128xf32>
      %118 = vector.shape_cast %117 : vector<1x8x128xf32> to vector<8x128xf32>
      %119 = vector.shape_cast %118 : vector<8x128xf32> to vector<1x8x128xf32>
      %cst_76 = arith.constant dense<0.000000e+00> : vector<1xf32>
      %120 = vector.multi_reduction <add>, %119, %cst_76 [1, 2] : vector<1x8x128xf32> to vector<1xf32>
      %121 = vector.shape_cast %120 : vector<1xf32> to vector<1x1x1xf32>
      %122 = vector.extract %121[0, 0, 0] : f32 from vector<1x1x1xf32>
      %cst_77 = arith.constant 9.216000e+03 : f32
      %123 = arith.divf %122, %cst_77 : f32
      %c1_78 = arith.constant 1 : index
      %c0_79 = arith.constant 0 : index
      %c0_80 = arith.constant 0 : index
      %124 = vector.load %arg6[%c1_78, %c0_79, %c0_80] : memref<4x8x128xf32, #tpu.memory_space<vmem>>, vector<1x8x128xf32>
      %125 = vector.shape_cast %124 : vector<1x8x128xf32> to vector<8x128xf32>
      %126 = vector.shape_cast %125 : vector<8x128xf32> to vector<1x8x128xf32>
      %cst_81 = arith.constant dense<0.000000e+00> : vector<1xf32>
      %127 = vector.multi_reduction <add>, %126, %cst_81 [1, 2] : vector<1x8x128xf32> to vector<1xf32>
      %128 = vector.shape_cast %127 : vector<1xf32> to vector<1x1x1xf32>
      %129 = vector.extract %128[0, 0, 0] : f32 from vector<1x1x1xf32>
      %c2_82 = arith.constant 2 : index
      %c0_83 = arith.constant 0 : index
      %c0_84 = arith.constant 0 : index
      %130 = vector.load %arg6[%c2_82, %c0_83, %c0_84] : memref<4x8x128xf32, #tpu.memory_space<vmem>>, vector<1x8x128xf32>
      %131 = vector.shape_cast %130 : vector<1x8x128xf32> to vector<8x128xf32>
      %132 = vector.shape_cast %131 : vector<8x128xf32> to vector<1x8x128xf32>
      %cst_85 = arith.constant dense<0.000000e+00> : vector<1xf32>
      %133 = vector.multi_reduction <add>, %132, %cst_85 [1, 2] : vector<1x8x128xf32> to vector<1xf32>
      %134 = vector.shape_cast %133 : vector<1xf32> to vector<1x1x1xf32>
      %135 = vector.extract %134[0, 0, 0] : f32 from vector<1x1x1xf32>
      %c3_86 = arith.constant 3 : index
      %c0_87 = arith.constant 0 : index
      %c0_88 = arith.constant 0 : index
      %136 = vector.load %arg6[%c3_86, %c0_87, %c0_88] : memref<4x8x128xf32, #tpu.memory_space<vmem>>, vector<1x8x128xf32>
      %137 = vector.shape_cast %136 : vector<1x8x128xf32> to vector<8x128xf32>
      %138 = vector.shape_cast %137 : vector<8x128xf32> to vector<1x8x128xf32>
      %cst_89 = arith.constant dense<0.000000e+00> : vector<1xf32>
      %139 = vector.multi_reduction <add>, %138, %cst_89 [1, 2] : vector<1x8x128xf32> to vector<1xf32>
      %140 = vector.shape_cast %139 : vector<1xf32> to vector<1x1x1xf32>
      %141 = vector.extract %140[0, 0, 0] : f32 from vector<1x1x1xf32>
      %142 = arith.addf %135, %141 : f32
      %cst_90 = arith.constant 2.000000e+00 : f32
      %143 = arith.mulf %cst_90, %129 : f32
      %cst_91 = arith.constant 9.99999974E-6 : f32
      %144 = arith.addf %143, %cst_91 : f32
      %cst_92 = arith.constant 9.99999974E-6 : f32
      %145 = arith.addf %142, %cst_92 : f32
      %146 = arith.divf %144, %145 : f32
      %cst_93 = arith.constant 1.000000e+00 : f32
      %147 = arith.subf %cst_93, %146 : f32
      %148 = arith.addf %123, %147 : f32
      %149 = vector.broadcast %148 : f32 to vector<1x1x128xf32>
      %c0_94 = arith.constant 0 : index
      %c0_95 = arith.constant 0 : index
      %c0_96 = arith.constant 0 : index
      %150 = vector.load %arg5[%c0_94, %c0_95, %c0_96] : memref<1x1x128xf32, #tpu.memory_space<vmem>>, vector<1x1x128xf32>
      tpu.vector_store %arg5[%c0_94, %c0_95, %c0_96], %149 {strides = array<i32>} : memref<1x1x128xf32, #tpu.memory_space<vmem>>, vector<1x1x128xf32>,
    } else {
    }
    return
  }
  func.func @transform_0(%arg0: i32, %arg1: i32, %arg2: memref<2xi32, #tpu.memory_space<smem>>) -> (i32, i32, i32, i32) {
    %c0_i32 = arith.constant 0 : i32
    %c0_i32_0 = arith.constant 0 : i32
    %c0_i32_1 = arith.constant 0 : i32
    return %arg0, %c0_i32, %arg1, %c0_i32_0 : i32, i32, i32, i32
  }
  func.func @transform_1(%arg0: i32, %arg1: i32, %arg2: memref<2xi32, #tpu.memory_space<smem>>) -> (i32, i32, i32, i32) {
    %c0_i32 = arith.constant 0 : i32
    %c0_i32_0 = arith.constant 0 : i32
    %c0_i32_1 = arith.constant 0 : i32
    return %arg0, %c0_i32, %arg1, %c0_i32_0 : i32, i32, i32, i32
  }
  func.func @transform_2(%arg0: i32, %arg1: i32, %arg2: memref<2xi32, #tpu.memory_space<smem>>) -> (i32, i32, i32) {
    %c0_i32 = arith.constant 0 : i32
    %c0_i32_0 = arith.constant 0 : i32
    %c0_i32_1 = arith.constant 0 : i32
    return %arg0, %c0_i32, %c0_i32_0 : i32, i32, i32
  }
}

</mosaic_0001>

<llo_original>
// kernel: tpu_custom_call.1
$region0: #{tpu_custom_call.1}
  #allocation0 [shape = 'u32[]', space=smem, size = 0x4, offset = 0x4, fixed_abs, tag = 'smem constant byte address 0x4 - core index']
  #allocation1 [shape = 'u32[144,128]{1,0:T(1,128)}', space=vmem, size = 0x12000, scoped, tag = 'internal scratch']
  #allocation2 [shape = 'f32[4,8,128]{2,1,0:T(8,128)}', space=vmem, size = 0x4000, scoped, tag = 'scratch operand']
  #allocation3 [shape = 's32[1]{0}', space=sflag, size = 0x4, scoped, tag = 'scoped memory for tpu_custom_call.1']
  #allocation4 [shape = 'u8[512]{0}', space=smem, size = 0x200, scoped, tag = 'prefetched SMEM operand 0']
  %s0 = inlined_call_operand.hbm [shape: s32[2], index: 0, kind: input, shape index: {}]
  %s1 = inlined_call_operand.hbm [shape: f32[2,4,96,128], index: 1, kind: input, shape index: {}]
  %s2 = inlined_call_operand.hbm [shape: s8[2,1,96,128], index: 2, kind: input, shape index: {}]
  %s3 = inlined_call_operand.hbm [shape: f32[2,1,128], index: 3, kind: output, shape index: {}]
  %s4 = sld [smem:[#allocation0]]
  $region57: #{tpu_custom_call.1} parent=0
    _
  %s6 = ssub.s32 1, %s4
  %s7 = scalar_select 0, %s6, %s4
  %9 = dma.hbm_to_smem %s0, 16, [#allocation4], [#allocation3]
  %10 = dma.done [#allocation3], 16
  %11 = sfence
  $region1: #{tpu_custom_call.1} parent=0
    #allocation5 [shape = 'u8[393216]{0}', space=vmem, size = 0x60000, scoped, tag = 'input window, operand 1']
    #allocation6 [shape = 's32[2]{0}', space=sflag, size = 0x8, scoped, tag = 'scoped memory for tpu_custom_call.1']
    #allocation7 [shape = 's32[2]{0}', space=sflag, size = 0x8, scoped, tag = 'scoped memory for tpu_custom_call.1']
    #allocation8 [shape = 'u8[24576]{0}', space=vmem, size = 0x6000, scoped, tag = 'input window, operand 2']
    #allocation9 [shape = 's32[2]{0}', space=sflag, size = 0x8, scoped, tag = 'scoped memory for tpu_custom_call.1']
    #allocation10 [shape = 'u8[1024]{0}', space=vmem, size = 0x400, scoped, tag = 'output window, operand 0']
    %12 = vsyncpa [#allocation6], 0
    %s13 = scalar_lea.sflag [#allocation6], 1
    %14 = vsyncpa %s13, 0
    %15 = vsyncpa [#allocation9], 0
    %s16 = scalar_lea.sflag [#allocation9], 1
    %17 = vsyncpa %s16, 0
    %18 = vsyncpa [#allocation7], 0
    %s19 = scalar_lea.sflag [#allocation7], 1
    %20 = vsyncpa %s19, 0
    loop: start=0, step=1, limit=4
    $region2: #{tpu_custom_call.1} parent=1 // loop_pre_header
      _
    $region3: #{tpu_custom_call.1} parent=1 // loop_header
      %s22 = sphi 0, %s26
      %p23 = scmp.ge.s32.totalorder %s22, 4
      %s29 = sphi 0, %s41
      %s30 = sphi 0, %s37
      %s31 = sphi 0, %s29
      %s32 = sphi 0, %s30
      %s33 = sphi 0, %s31
      %s34 = sphi 0, %s32
      %s46 = sphi 0, %s48
      %s49 = sphi 0, %s46
      %s50 = sphi 0, %s49
      %s66 = sphi 0, %s50
      %s74 = sphi 0, %s76
      %s77 = sphi 0, %s74
      %s78 = sphi 0, %s77
      %s94 = sphi 0, %s78
      %s100 = sphi 0, %s102
      %s103 = sphi 0, %s100
      %s104 = sphi 0, %s103
      %s120 = sphi 0, %s104
    $region4: #{tpu_custom_call.1} parent=1 // loop_header_branch
      %25 = sbr.rel (%p23) target = $region8
    $region5: #{tpu_custom_call.1} parent=1 // loop_body
      %s27 = ssub.s32 %s22, 1
      %s28 = ssub.s32 %s22, 2
      %s35 = sadd.s32 1, %s30
      %p36 = scmp.ge.s32.totalorder %s35, 1
      %s37 = scalar_select %p36, 0, %s35
      %s38 = sadd.s32 1, %s29
      %s39 = scalar_select %p36, %s38, %s29
      %p40 = scmp.ge.s32.totalorder %s39, 2
      %s41 = scalar_select %p40, 0, %s39
      %s42 = ssub.s32 %s29, %s41
      %s43 = ssub.s32 %s30, %s37
      %s44 = sor.u32 %s42, %s43
      %p45 = scmp.eq.s32.totalorder %s44, 0
      %s47 = sadd.s32 %s46, 1
      %s48 = scalar_select %p45, %s46, %s47
      %p51 = pneg %p45
      %p52 = scmp.eq.s32.totalorder %s22, 1
      %p53 = por %p51, %p52
      %p54 = scmp.ne.s32.totalorder %s46, %s49
      %p55 = scmp.eq.s32.totalorder %s22, 0
      %p56 = por %p54, %p55
      %p57 = scmp.ne.s32.totalorder %s46, %s49
      %p58 = scmp.eq.s32.totalorder %s27, 1
      %p59 = por %p57, %p58
      %p60 = scmp.ne.s32.totalorder %s49, %s50
      %p61 = scmp.eq.s32.totalorder %s27, 0
      %p62 = por %p60, %p61
      %p63 = scmp.ne.s32.totalorder %s49, %s50
      %p64 = scmp.eq.s32.totalorder %s28, 1
      %p65 = por %p63, %p64
      %p67 = scmp.ne.s32.totalorder %s50, %s66
      %p68 = scmp.eq.s32.totalorder %s28, 0
      %p69 = por %p67, %p68
      %s70 = ssub.s32 %s29, %s41
      %s71 = ssub.s32 %s30, %s37
      %s72 = sor.u32 %s70, %s71
      %p73 = scmp.eq.s32.totalorder %s72, 0
      %s75 = sadd.s32 %s74, 1
      %s76 = scalar_select %p73, %s74, %s75
      %p79 = pneg %p73
      %p80 = scmp.eq.s32.totalorder %s22, 1
      %p81 = por %p79, %p80
      %p82 = scmp.ne.s32.totalorder %s74, %s77
      %p83 = scmp.eq.s32.totalorder %s22, 0
      %p84 = por %p82, %p83
      %p85 = scmp.ne.s32.totalorder %s74, %s77
      %p86 = scmp.eq.s32.totalorder %s27, 1
      %p87 = por %p85, %p86
      %p88 = scmp.ne.s32.totalorder %s77, %s78
      %p89 = scmp.eq.s32.totalorder %s27, 0
      %p90 = por %p88, %p89
      %p91 = scmp.ne.s32.totalorder %s77, %s78
      %p92 = scmp.eq.s32.totalorder %s28, 1
      %p93 = por %p91, %p92
      %p95 = scmp.ne.s32.totalorder %s78, %s94
      %p96 = scmp.eq.s32.totalorder %s28, 0
      %p97 = por %p95, %p96
      %s98 = ssub.s32 %s29, %s41
      %p99 = scmp.eq.s32.totalorder %s98, 0
      %s101 = sadd.s32 %s100, 1
      %s102 = scalar_select %p99, %s100, %s101
      %p105 = pneg %p99
      %p106 = scmp.eq.s32.totalorder %s22, 1
      %p107 = por %p105, %p106
      %p108 = scmp.ne.s32.totalorder %s100, %s103
      %p109 = scmp.eq.s32.totalorder %s22, 0
      %p110 = por %p108, %p109
      %p111 = scmp.ne.s32.totalorder %s100, %s103
      %p112 = scmp.eq.s32.totalorder %s27, 1
      %p113 = por %p111, %p112
      %p114 = scmp.ne.s32.totalorder %s103, %s104
      %p115 = scmp.eq.s32.totalorder %s27, 0
      %p116 = por %p114, %p115
      %p117 = scmp.ne.s32.totalorder %s103, %s104
      %p118 = scmp.eq.s32.totalorder %s28, 1
      %p119 = por %p117, %p118
      %p121 = scmp.ne.s32.totalorder %s104, %s120
      %p122 = scmp.eq.s32.totalorder %s28, 0
      %p123 = por %p121, %p122
      %p124 = scmp.le.s32.totalorder 1, %s22
      %p125 = scmp.lt.s32.totalorder %s22, 3
      %p126 = pnand %p124, %p125
      %p127 = pneg %p126
      // Predicated region
      $region9: #{tpu_custom_call.1} parent=5 // pred_check
        _
      $region10: #{tpu_custom_call.1} parent=5 // pred_check_branch
        %129 = sbr.rel (%p126) target = $region12
      $region11: #{tpu_custom_call.1} parent=5 // pred_region
        %s130 = ssub.s32 %s22, 1
      $region12: #{tpu_custom_call.1} parent=5 // pred_fallthru
        _
      %p131 = scmp.lt.s32.totalorder %s22, 2
      // Predicated region
      $region13: #{tpu_custom_call.1} parent=5 // pred_check
        %p132 = pneg %p131
      $region14: #{tpu_custom_call.1} parent=5 // pred_check_branch
        %134 = sbr.rel (%p132) target = $region16
      $region15: #{tpu_custom_call.1} parent=5 // pred_region
        // Predicated region
        $region17: #{tpu_custom_call.1} parent=15 // pred_check
          %p135 = pneg %p56
        $region18: #{tpu_custom_call.1} parent=15 // pred_check_branch
          %137 = sbr.rel (%p135) target = $region20
        $region19: #{tpu_custom_call.1} parent=15 // pred_region
          %s138 = sand.u32 %s46, 1
          %s139 = scalar_lea.sflag [#allocation6], %s138
          %s140 = sand.u32 %s46, 1
          %s141 = smul.addr %s140, 384
          %s142 = scalar_lea.vmem [#allocation5], %s141
          %s143 = smul.u32 12, %s30
          %s145 = ssub.s32 6144, 6144
          %146 = vsyncadd %s139, %s145
          %s147 = smul.addr %s29, 48
          %s148 = sadd.s32 %s143, %s147
          %s149 = smul.addr %s148, 128
          %s150 = scalar_lea.hbm %s1, %s149
          %s151 = sshll.u32 %s142, 4
          %s152 = int_to_ptr.vmem [resolvable:$true] %s151
          %157 = dma.hbm_to_vmem [thread:$0]  %s150, 6144, %s152, %s139, 128, 128, 8
        $region20: #{tpu_custom_call.1} parent=15 // pred_fallthru
          _
        // Predicated region
        $region21: #{tpu_custom_call.1} parent=15 // pred_check
          %p158 = pneg %p84
        $region22: #{tpu_custom_call.1} parent=15 // pred_check_branch
          %160 = sbr.rel (%p158) target = $region24
        $region23: #{tpu_custom_call.1} parent=15 // pred_region
          %s161 = sand.u32 %s74, 1
          %s162 = scalar_lea.sflag [#allocation9], %s161
          %s163 = sand.u32 %s74, 1
          %s164 = smul.addr %s163, 24
          %s165 = scalar_lea.vmem [#allocation8], %s164
          %s166 = smul.u32 3, %s30
          %s168 = ssub.s32 384, 384
          %169 = vsyncadd %s162, %s168
          %s170 = smul.addr %s29, 3
          %s171 = sadd.s32 %s166, %s170
          %s172 = smul.addr %s171, 128
          %s173 = scalar_lea.hbm %s2, %s172
          %s174 = sshll.u32 %s165, 4
          %s175 = int_to_ptr.vmem [resolvable:$true] %s174
          %180 = dma.hbm_to_vmem [thread:$0]  %s173, 384, %s175, %s162, 128, 128, 8
        $region24: #{tpu_custom_call.1} parent=15 // pred_fallthru
          _
      $region16: #{tpu_custom_call.1} parent=5 // pred_fallthru
        _
      %p181 = scmp.le.s32.totalorder 1, %s22
      %p182 = scmp.lt.s32.totalorder %s22, 3
      %p183 = pnand %p181, %p182
      %p184 = pneg %p183
      // Predicated region
      $region25: #{tpu_custom_call.1} parent=5 // pred_check
        _
      $region26: #{tpu_custom_call.1} parent=5 // pred_check_branch
        %186 = sbr.rel (%p183) target = $region28
      $region27: #{tpu_custom_call.1} parent=5 // pred_region
        %s187 = ssub.s32 %s22, 1
        %s188 = sand.u32 %s49, 1
        %s189 = scalar_lea.sflag [#allocation6], %s188
        %s190 = sand.u32 %s49, 1
        %s191 = smul.addr %s190, 384
        %s192 = scalar_lea.vmem [#allocation5], %s191
        // Predicated region
        $region29: #{tpu_custom_call.1} parent=27 // pred_check
          %p193 = pneg %p62
        $region30: #{tpu_custom_call.1} parent=27 // pred_check_branch
          %195 = sbr.rel (%p193) target = $region32
        $region31: #{tpu_custom_call.1} parent=27 // pred_region
          %196 = dma.done %s189, 6144
        $region32: #{tpu_custom_call.1} parent=27 // pred_fallthru
          _
        %s197 = sand.u32 %s77, 1
        %s198 = scalar_lea.sflag [#allocation9], %s197
        %s199 = sand.u32 %s77, 1
        %s200 = smul.addr %s199, 24
        %s201 = scalar_lea.vmem [#allocation8], %s200
        // Predicated region
        $region33: #{tpu_custom_call.1} parent=27 // pred_check
          %p202 = pneg %p90
        $region34: #{tpu_custom_call.1} parent=27 // pred_check_branch
          %204 = sbr.rel (%p202) target = $region36
        $region35: #{tpu_custom_call.1} parent=27 // pred_region
          %205 = dma.done %s198, 384
        $region36: #{tpu_custom_call.1} parent=27 // pred_fallthru
          _
        %s206 = sand.u32 %s49, 1
        %s207 = scalar_lea.sflag [#allocation6], %s206
        %s208 = sand.u32 %s49, 1
        %s209 = smul.addr %s208, 384
        %s210 = scalar_lea.vmem [#allocation5], %s209
        %p211 = pneg %p62
        %p212 = pneg %p59
        %s213 = sand.u32 %s77, 1
        %s214 = scalar_lea.sflag [#allocation9], %s213
        %s215 = sand.u32 %s77, 1
        %s216 = smul.addr %s215, 24
        %s217 = scalar_lea.vmem [#allocation8], %s216
        %p218 = pneg %p90
        %p219 = pneg %p87
        %p220 = pneg %p116
        %p221 = pneg %p113
        %s222 = sand.u32 %s103, 1
        %s223 = scalar_lea.sflag [#allocation7], %s222
        %s224 = sand.u32 %s103, 1
        %s225 = scalar_lea.vmem [#allocation10], %s224
        %s226 = smul.u32 12, %s32
        %s227 = smul.u32 3, %s32
        %p228 = scmp.eq.s32.totalorder %s32, 0
        // Predicated region
        $region37: #{tpu_custom_call.1} parent=27 // pred_check
          %p229 = pneg %p228
        $region38: #{tpu_custom_call.1} parent=27 // pred_check_branch
          %231 = sbr.rel (%p229) target = $region40
        $region39: #{tpu_custom_call.1} parent=27 // pred_region
          %232 = vst [vmem:[#allocation2] sm:$0xff] 0.0
          %233 = vst [vmem:[#allocation2 + $0x8] sm:$0xff] 0.0
          %234 = vst [vmem:[#allocation2 + $0x10] sm:$0xff] 0.0
          %235 = vst [vmem:[#allocation2 + $0x18] sm:$0xff] 0.0
        $region40: #{tpu_custom_call.1} parent=27 // pred_fallthru
          _
        %s236 = sld [smem:[#allocation4 + %s31]]
        %v237 = vld [vmem:[%s201] sm:$0xff]
        %v238 = vld [vmem:[%s201 + $0x8] sm:$0xff]
        %v239 = vld [vmem:[%s201 + $0x10] sm:$0xff]
        %v240 = vunpack.c.0.s8 %v237
        %v241 = vunpack.c.1.s8 %v237
        %v242 = vunpack.c.2.s8 %v237
        %v243 = vunpack.c.3.s8 %v237
        %v244 = vunpack.c.0.s8 %v238
        %v245 = vunpack.c.1.s8 %v238
        %v246 = vunpack.c.2.s8 %v238
        %v247 = vunpack.c.3.s8 %v238
        %v248 = vunpack.c.0.s8 %v239
        %v249 = vunpack.c.1.s8 %v239
        %v250 = vunpack.c.2.s8 %v239
        %v251 = vunpack.c.3.s8 %v239
        %v252 = vld [vmem:[%s192] sm:$0xff]
        %v253 = vld [vmem:[%s192 + $0x8] sm:$0xff]
        %v254 = vld [vmem:[%s192 + $0x10] sm:$0xff]
        %v255 = vld [vmem:[%s192 + $0x18] sm:$0xff]
        %v256 = vld [vmem:[%s192 + $0x20] sm:$0xff]
        %v257 = vld [vmem:[%s192 + $0x28] sm:$0xff]
        %v258 = vld [vmem:[%s192 + $0x30] sm:$0xff]
        %v259 = vld [vmem:[%s192 + $0x38] sm:$0xff]
        %v260 = vld [vmem:[%s192 + $0x40] sm:$0xff]
        %v261 = vld [vmem:[%s192 + $0x48] sm:$0xff]
        %v262 = vld [vmem:[%s192 + $0x50] sm:$0xff]
        %v263 = vld [vmem:[%s192 + $0x58] sm:$0xff]
        %s264 = scalar_lea.vmem %s192, 96 [#allocation5]
        %v265 = vld [vmem:[%s264] sm:$0xff]
        %v266 = vld [vmem:[%s264 + $0x8] sm:$0xff]
        %v267 = vld [vmem:[%s264 + $0x10] sm:$0xff]
        %v268 = vld [vmem:[%s264 + $0x18] sm:$0xff]
        %v269 = vld [vmem:[%s264 + $0x20] sm:$0xff]
        %v270 = vld [vmem:[%s264 + $0x28] sm:$0xff]
        %v271 = vld [vmem:[%s264 + $0x30] sm:$0xff]
        %v272 = vld [vmem:[%s264 + $0x38] sm:$0xff]
        %v273 = vld [vmem:[%s264 + $0x40] sm:$0xff]
        %v274 = vld [vmem:[%s264 + $0x48] sm:$0xff]
        %v275 = vld [vmem:[%s264 + $0x50] sm:$0xff]
        %v276 = vld [vmem:[%s264 + $0x58] sm:$0xff]
        %v277 = vmax.f32 %v252, %v265
        %v278 = vmax.f32 %v253, %v266
        %v279 = vmax.f32 %v254, %v267
        %v280 = vmax.f32 %v255, %v268
        %v281 = vmax.f32 %v256, %v269
        %v282 = vmax.f32 %v257, %v270
        %v283 = vmax.f32 %v258, %v271
        %v284 = vmax.f32 %v259, %v272
        %v285 = vmax.f32 %v260, %v273
        %v286 = vmax.f32 %v261, %v274
        %v287 = vmax.f32 %v262, %v275
        %v288 = vmax.f32 %v263, %v276
        %s289 = scalar_lea.vmem %s192, 192 [#allocation5]
        %v290 = vld [vmem:[%s289] sm:$0xff]
        %v291 = vld [vmem:[%s289 + $0x8] sm:$0xff]
        %v292 = vld [vmem:[%s289 + $0x10] sm:$0xff]
        %v293 = vld [vmem:[%s289 + $0x18] sm:$0xff]
        %v294 = vld [vmem:[%s289 + $0x20] sm:$0xff]
        %v295 = vld [vmem:[%s289 + $0x28] sm:$0xff]
        %v296 = vld [vmem:[%s289 + $0x30] sm:$0xff]
        %v297 = vld [vmem:[%s289 + $0x38] sm:$0xff]
        %v298 = vld [vmem:[%s289 + $0x40] sm:$0xff]
        %v299 = vld [vmem:[%s289 + $0x48] sm:$0xff]
        %v300 = vld [vmem:[%s289 + $0x50] sm:$0xff]
        %v301 = vld [vmem:[%s289 + $0x58] sm:$0xff]
        %v302 = vmax.f32 %v277, %v290
        %v303 = vmax.f32 %v278, %v291
        %v304 = vmax.f32 %v279, %v292
        %v305 = vmax.f32 %v280, %v293
        %v306 = vmax.f32 %v281, %v294
        %v307 = vmax.f32 %v282, %v295
        %v308 = vmax.f32 %v283, %v296
        %v309 = vmax.f32 %v284, %v297
        %v310 = vmax.f32 %v285, %v298
        %v311 = vmax.f32 %v286, %v299
        %v312 = vmax.f32 %v287, %v300
        %v313 = vmax.f32 %v288, %v301
        %s314 = scalar_lea.vmem %s192, 288 [#allocation5]
        %v315 = vld [vmem:[%s314] sm:$0xff]
        %v316 = vld [vmem:[%s314 + $0x8] sm:$0xff]
        %v317 = vld [vmem:[%s314 + $0x10] sm:$0xff]
        %v318 = vld [vmem:[%s314 + $0x18] sm:$0xff]
        %v319 = vld [vmem:[%s314 + $0x20] sm:$0xff]
        %v320 = vld [vmem:[%s314 + $0x28] sm:$0xff]
        %v321 = vld [vmem:[%s314 + $0x30] sm:$0xff]
        %v322 = vld [vmem:[%s314 + $0x38] sm:$0xff]
        %v323 = vld [vmem:[%s314 + $0x40] sm:$0xff]
        %v324 = vld [vmem:[%s314 + $0x48] sm:$0xff]
        %v325 = vld [vmem:[%s314 + $0x50] sm:$0xff]
        %v326 = vld [vmem:[%s314 + $0x58] sm:$0xff]
        %v327 = vmax.f32 %v302, %v315
        %v328 = vmax.f32 %v303, %v316
        %v329 = vmax.f32 %v304, %v317
        %v330 = vmax.f32 %v305, %v318
        %v331 = vmax.f32 %v306, %v319
        %v332 = vmax.f32 %v307, %v320
        %v333 = vmax.f32 %v308, %v321
        %v334 = vmax.f32 %v309, %v322
        %v335 = vmax.f32 %v310, %v323
        %v336 = vmax.f32 %v311, %v324
        %v337 = vmax.f32 %v312, %v325
        %v338 = vmax.f32 %v313, %v326
        %v339 = vsub.f32 %v252, %v327
        %v340 = vsub.f32 %v253, %v328
        %v341 = vsub.f32 %v254, %v329
        %v342 = vsub.f32 %v255, %v330
        %v343 = vsub.f32 %v256, %v331
        %v344 = vsub.f32 %v257, %v332
        %v345 = vsub.f32 %v258, %v333
        %v346 = vsub.f32 %v259, %v334
        %v347 = vsub.f32 %v260, %v335
        %v348 = vsub.f32 %v261, %v336
        %v349 = vsub.f32 %v262, %v337
        %v350 = vsub.f32 %v263, %v338
        %v351 = vmul.f32 %v339, 1.442695
        %v352 = vpow.pop %v351
        %v353 = vmul.f32 %v340, 1.442695
        %v354 = vpow.pop %v353
        %v355 = vmul.f32 %v341, 1.442695
        %v356 = vpow.pop %v355
        %v357 = vmul.f32 %v342, 1.442695
        %v358 = vpow.pop %v357
        %v359 = vmul.f32 %v343, 1.442695
        %v360 = vpow.pop %v359
        %v361 = vmul.f32 %v344, 1.442695
        %v362 = vpow.pop %v361
        %v363 = vmul.f32 %v345, 1.442695
        %v364 = vpow.pop %v363
        %v365 = vmul.f32 %v346, 1.442695
        %v366 = vpow.pop %v365
        %v367 = vmul.f32 %v347, 1.442695
        %v368 = vpow.pop %v367
        %v369 = vmul.f32 %v348, 1.442695
        %v370 = vpow.pop %v369
        %v371 = vmul.f32 %v349, 1.442695
        %v372 = vpow.pop %v371
        %v373 = vmul.f32 %v350, 1.442695
        %v374 = vpow.pop %v373
        %v375 = vadd.f32 %v352, 0.0
        %v376 = vadd.f32 %v354, 0.0
        %v377 = vadd.f32 %v356, 0.0
        %v378 = vadd.f32 %v358, 0.0
        %v379 = vadd.f32 %v360, 0.0
        %v380 = vadd.f32 %v362, 0.0
        %v381 = vadd.f32 %v364, 0.0
        %v382 = vadd.f32 %v366, 0.0
        %v383 = vadd.f32 %v368, 0.0
        %v384 = vadd.f32 %v370, 0.0
        %v385 = vadd.f32 %v372, 0.0
        %v386 = vadd.f32 %v374, 0.0
        %vm387 = vcmp.eq.s32.totalorder %v240, 0
        %vm388 = vcmp.eq.s32.totalorder %v241, 0
        %vm389 = vcmp.eq.s32.totalorder %v242, 0
        %vm390 = vcmp.eq.s32.totalorder %v243, 0
        %vm391 = vcmp.eq.s32.totalorder %v244, 0
        %vm392 = vcmp.eq.s32.totalorder %v245, 0
        %vm393 = vcmp.eq.s32.totalorder %v246, 0
        %vm394 = vcmp.eq.s32.totalorder %v247, 0
        %vm395 = vcmp.eq.s32.totalorder %v248, 0
        %vm396 = vcmp.eq.s32.totalorder %v249, 0
        %vm397 = vcmp.eq.s32.totalorder %v250, 0
        %vm398 = vcmp.eq.s32.totalorder %v251, 0
        %v399 = vsel %vm387, %v252, 0.0
        %v400 = vsel %vm388, %v253, 0.0
        %v401 = vsel %vm389, %v254, 0.0
        %v402 = vsel %vm390, %v255, 0.0
        %v403 = vsel %vm391, %v256, 0.0
        %v404 = vsel %vm392, %v257, 0.0
        %v405 = vsel %vm393, %v258, 0.0
        %v406 = vsel %vm394, %v259, 0.0
        %v407 = vsel %vm395, %v260, 0.0
        %v408 = vsel %vm396, %v261, 0.0
        %v409 = vsel %vm397, %v262, 0.0
        %v410 = vsel %vm398, %v263, 0.0
        %v411 = vadd.f32 %v399, 0.0
        %v412 = vadd.f32 %v400, 0.0
        %v413 = vadd.f32 %v401, 0.0
        %v414 = vadd.f32 %v402, 0.0
        %v415 = vadd.f32 %v403, 0.0
        %v416 = vadd.f32 %v404, 0.0
        %v417 = vadd.f32 %v405, 0.0
        %v418 = vadd.f32 %v406, 0.0
        %v419 = vadd.f32 %v407, 0.0
        %v420 = vadd.f32 %v408, 0.0
        %v421 = vadd.f32 %v409, 0.0
        %v422 = vadd.f32 %v410, 0.0
        %v423 = vsub.f32 %v265, %v327
        %v424 = vsub.f32 %v266, %v328
        %v425 = vsub.f32 %v267, %v329
        %v426 = vsub.f32 %v268, %v330
        %v427 = vsub.f32 %v269, %v331
        %v428 = vsub.f32 %v270, %v332
        %v429 = vsub.f32 %v271, %v333
        %v430 = vsub.f32 %v272, %v334
        %v431 = vsub.f32 %v273, %v335
        %v432 = vsub.f32 %v274, %v336
        %v433 = vsub.f32 %v275, %v337
        %v434 = vsub.f32 %v276, %v338
        %v435 = vmul.f32 %v423, 1.442695
        %v436 = vpow.pop %v435
        %v437 = vmul.f32 %v424, 1.442695
        %v438 = vpow.pop %v437
        %v439 = vmul.f32 %v425, 1.442695
        %v440 = vpow.pop %v439
        %v441 = vmul.f32 %v426, 1.442695
        %v442 = vpow.pop %v441
        %v443 = vmul.f32 %v427, 1.442695
        %v444 = vpow.pop %v443
        %v445 = vmul.f32 %v428, 1.442695
        %v446 = vpow.pop %v445
        %v447 = vmul.f32 %v429, 1.442695
        %v448 = vpow.pop %v447
        %v449 = vmul.f32 %v430, 1.442695
        %v450 = vpow.pop %v449
        %v451 = vmul.f32 %v431, 1.442695
        %v452 = vpow.pop %v451
        %v453 = vmul.f32 %v432, 1.442695
        %v454 = vpow.pop %v453
        %v455 = vmul.f32 %v433, 1.442695
        %v456 = vpow.pop %v455
        %v457 = vmul.f32 %v434, 1.442695
        %v458 = vpow.pop %v457
        %v459 = vadd.f32 %v375, %v436
        %v460 = vadd.f32 %v376, %v438
        %v461 = vadd.f32 %v377, %v440
        %v462 = vadd.f32 %v378, %v442
        %v463 = vadd.f32 %v379, %v444
        %v464 = vadd.f32 %v380, %v446
        %v465 = vadd.f32 %v381, %v448
        %v466 = vadd.f32 %v382, %v450
        %v467 = vadd.f32 %v383, %v452
        %v468 = vadd.f32 %v384, %v454
        %v469 = vadd.f32 %v385, %v456
        %v470 = vadd.f32 %v386, %v458
        %vm471 = vcmp.eq.s32.totalorder %v240, 1
        %vm472 = vcmp.eq.s32.totalorder %v241, 1
        %vm473 = vcmp.eq.s32.totalorder %v242, 1
        %vm474 = vcmp.eq.s32.totalorder %v243, 1
        %vm475 = vcmp.eq.s32.totalorder %v244, 1
        %vm476 = vcmp.eq.s32.totalorder %v245, 1
        %vm477 = vcmp.eq.s32.totalorder %v246, 1
        %vm478 = vcmp.eq.s32.totalorder %v247, 1
        %vm479 = vcmp.eq.s32.totalorder %v248, 1
        %vm480 = vcmp.eq.s32.totalorder %v249, 1
        %vm481 = vcmp.eq.s32.totalorder %v250, 1
        %vm482 = vcmp.eq.s32.totalorder %v251, 1
        %v483 = vsel %vm471, %v265, 0.0
        %v484 = vsel %vm472, %v266, 0.0
        %v485 = vsel %vm473, %v267, 0.0
        %v486 = vsel %vm474, %v268, 0.0
        %v487 = vsel %vm475, %v269, 0.0
        %v488 = vsel %vm476, %v270, 0.0
        %v489 = vsel %vm477, %v271, 0.0
        %v490 = vsel %vm478, %v272, 0.0
        %v491 = vsel %vm479, %v273, 0.0
        %v492 = vsel %vm480, %v274, 0.0
        %v493 = vsel %vm481, %v275, 0.0
        %v494 = vsel %vm482, %v276, 0.0
        %v495 = vadd.f32 %v411, %v483
        %v496 = vadd.f32 %v412, %v484
        %v497 = vadd.f32 %v413, %v485
        %v498 = vadd.f32 %v414, %v486
        %v499 = vadd.f32 %v415, %v487
        %v500 = vadd.f32 %v416, %v488
        %v501 = vadd.f32 %v417, %v489
        %v502 = vadd.f32 %v418, %v490
        %v503 = vadd.f32 %v419, %v491
        %v504 = vadd.f32 %v420, %v492
        %v505 = vadd.f32 %v421, %v493
        %v506 = vadd.f32 %v422, %v494
        %v507 = vsub.f32 %v290, %v327
        %v508 = vsub.f32 %v291, %v328
        %v509 = vsub.f32 %v292, %v329
        %v510 = vsub.f32 %v293, %v330
        %v511 = vsub.f32 %v294, %v331
        %v512 = vsub.f32 %v295, %v332
        %v513 = vsub.f32 %v296, %v333
        %v514 = vsub.f32 %v297, %v334
        %v515 = vsub.f32 %v298, %v335
        %v516 = vsub.f32 %v299, %v336
        %v517 = vsub.f32 %v300, %v337
        %v518 = vsub.f32 %v301, %v338
        %v519 = vmul.f32 %v507, 1.442695
        %v520 = vpow.pop %v519
        %v521 = vmul.f32 %v508, 1.442695
        %v522 = vpow.pop %v521
        %v523 = vmul.f32 %v509, 1.442695
        %v524 = vpow.pop %v523
        %v525 = vmul.f32 %v510, 1.442695
        %v526 = vpow.pop %v525
        %v527 = vmul.f32 %v511, 1.442695
        %v528 = vpow.pop %v527
        %v529 = vmul.f32 %v512, 1.442695
        %v530 = vpow.pop %v529
        %v531 = vmul.f32 %v513, 1.442695
        %v532 = vpow.pop %v531
        %v533 = vmul.f32 %v514, 1.442695
        %v534 = vpow.pop %v533
        %v535 = vmul.f32 %v515, 1.442695
        %v536 = vpow.pop %v535
        %v537 = vmul.f32 %v516, 1.442695
        %v538 = vpow.pop %v537
        %v539 = vmul.f32 %v517, 1.442695
        %v540 = vpow.pop %v539
        %v541 = vmul.f32 %v518, 1.442695
        %v542 = vpow.pop %v541
        %v543 = vadd.f32 %v459, %v520
        %v544 = vadd.f32 %v460, %v522
        %v545 = vadd.f32 %v461, %v524
        %v546 = vadd.f32 %v462, %v526
        %v547 = vadd.f32 %v463, %v528
        %v548 = vadd.f32 %v464, %v530
        %v549 = vadd.f32 %v465, %v532
        %v550 = vadd.f32 %v466, %v534
        %v551 = vadd.f32 %v467, %v536
        %v552 = vadd.f32 %v468, %v538
        %v553 = vadd.f32 %v469, %v540
        %v554 = vadd.f32 %v470, %v542
        %vm555 = vcmp.eq.s32.totalorder %v240, 2
        %vm556 = vcmp.eq.s32.totalorder %v241, 2
        %vm557 = vcmp.eq.s32.totalorder %v242, 2
        %vm558 = vcmp.eq.s32.totalorder %v243, 2
        %vm559 = vcmp.eq.s32.totalorder %v244, 2
        %vm560 = vcmp.eq.s32.totalorder %v245, 2
        %vm561 = vcmp.eq.s32.totalorder %v246, 2
        %vm562 = vcmp.eq.s32.totalorder %v247, 2
        %vm563 = vcmp.eq.s32.totalorder %v248, 2
        %vm564 = vcmp.eq.s32.totalorder %v249, 2
        %vm565 = vcmp.eq.s32.totalorder %v250, 2
        %vm566 = vcmp.eq.s32.totalorder %v251, 2
        %v567 = vsel %vm555, %v290, 0.0
        %v568 = vsel %vm556, %v291, 0.0
        %v569 = vsel %vm557, %v292, 0.0
        %v570 = vsel %vm558, %v293, 0.0
        %v571 = vsel %vm559, %v294, 0.0
        %v572 = vsel %vm560, %v295, 0.0
        %v573 = vsel %vm561, %v296, 0.0
        %v574 = vsel %vm562, %v297, 0.0
        %v575 = vsel %vm563, %v298, 0.0
        %v576 = vsel %vm564, %v299, 0.0
        %v577 = vsel %vm565, %v300, 0.0
        %v578 = vsel %vm566, %v301, 0.0
        %v579 = vadd.f32 %v495, %v567
        %v580 = vadd.f32 %v496, %v568
        %v581 = vadd.f32 %v497, %v569
        %v582 = vadd.f32 %v498, %v570
        %v583 = vadd.f32 %v499, %v571
        %v584 = vadd.f32 %v500, %v572
        %v585 = vadd.f32 %v501, %v573
        %v586 = vadd.f32 %v502, %v574
        %v587 = vadd.f32 %v503, %v575
        %v588 = vadd.f32 %v504, %v576
        %v589 = vadd.f32 %v505, %v577
        %v590 = vadd.f32 %v506, %v578
        %v591 = vsub.f32 %v315, %v327
        %v592 = vsub.f32 %v316, %v328
        %v593 = vsub.f32 %v317, %v329
        %v594 = vsub.f32 %v318, %v330
        %v595 = vsub.f32 %v319, %v331
        %v596 = vsub.f32 %v320, %v332
        %v597 = vsub.f32 %v321, %v333
        %v598 = vsub.f32 %v322, %v334
        %v599 = vsub.f32 %v323, %v335
        %v600 = vsub.f32 %v324, %v336
        %v601 = vsub.f32 %v325, %v337
        %v602 = vsub.f32 %v326, %v338
        %v603 = vmul.f32 %v591, 1.442695
        %v604 = vpow.pop %v603
        %v605 = vmul.f32 %v592, 1.442695
        %v606 = vpow.pop %v605
        %v607 = vmul.f32 %v593, 1.442695
        %v608 = vpow.pop %v607
        %v609 = vmul.f32 %v594, 1.442695
        %v610 = vpow.pop %v609
        %v611 = vmul.f32 %v595, 1.442695
        %v612 = vpow.pop %v611
        %v613 = vmul.f32 %v596, 1.442695
        %v614 = vpow.pop %v613
        %v615 = vmul.f32 %v597, 1.442695
        %v616 = vpow.pop %v615
        %v617 = vmul.f32 %v598, 1.442695
        %v618 = vpow.pop %v617
        %v619 = vmul.f32 %v599, 1.442695
        %v620 = vpow.pop %v619
        %v621 = vmul.f32 %v600, 1.442695
        %v622 = vpow.pop %v621
        %v623 = vmul.f32 %v601, 1.442695
        %v624 = vpow.pop %v623
        %v625 = vmul.f32 %v602, 1.442695
        %v626 = vpow.pop %v625
        %v627 = vadd.f32 %v543, %v604
        %v628 = vadd.f32 %v544, %v606
        %v629 = vadd.f32 %v545, %v608
        %v630 = vadd.f32 %v546, %v610
        %v631 = vadd.f32 %v547, %v612
        %v632 = vadd.f32 %v548, %v614
        %v633 = vadd.f32 %v549, %v616
        %v634 = vadd.f32 %v550, %v618
        %v635 = vadd.f32 %v551, %v620
        %v636 = vadd.f32 %v552, %v622
        %v637 = vadd.f32 %v553, %v624
        %v638 = vadd.f32 %v554, %v626
        %vm639 = vcmp.eq.s32.totalorder %v240, 3
        %vm640 = vcmp.eq.s32.totalorder %v241, 3
        %vm641 = vcmp.eq.s32.totalorder %v242, 3
        %vm642 = vcmp.eq.s32.totalorder %v243, 3
        %vm643 = vcmp.eq.s32.totalorder %v244, 3
        %vm644 = vcmp.eq.s32.totalorder %v245, 3
        %vm645 = vcmp.eq.s32.totalorder %v246, 3
        %vm646 = vcmp.eq.s32.totalorder %v247, 3
        %vm647 = vcmp.eq.s32.totalorder %v248, 3
        %vm648 = vcmp.eq.s32.totalorder %v249, 3
        %vm649 = vcmp.eq.s32.totalorder %v250, 3
        %vm650 = vcmp.eq.s32.totalorder %v251, 3
        %v651 = vsel %vm639, %v315, 0.0
        %v652 = vsel %vm640, %v316, 0.0
        %v653 = vsel %vm641, %v317, 0.0
        %v654 = vsel %vm642, %v318, 0.0
        %v655 = vsel %vm643, %v319, 0.0
        %v656 = vsel %vm644, %v320, 0.0
        %v657 = vsel %vm645, %v321, 0.0
        %v658 = vsel %vm646, %v322, 0.0
        %v659 = vsel %vm647, %v323, 0.0
        %v660 = vsel %vm648, %v324, 0.0
        %v661 = vsel %vm649, %v325, 0.0
        %v662 = vsel %vm650, %v326, 0.0
        %v663 = vadd.f32 %v579, %v651
        %v664 = vadd.f32 %v580, %v652
        %v665 = vadd.f32 %v581, %v653
        %v666 = vadd.f32 %v582, %v654
        %v667 = vadd.f32 %v583, %v655
        %v668 = vadd.f32 %v584, %v656
        %v669 = vadd.f32 %v585, %v657
        %v670 = vadd.f32 %v586, %v658
        %v671 = vadd.f32 %v587, %v659
        %v672 = vadd.f32 %v588, %v660
        %v673 = vadd.f32 %v589, %v661
        %v674 = vadd.f32 %v590, %v662
        %v675 = vlog2.pop %v627
        %v676 = vmul.f32 %v675, 0.6931472
        %v677 = vlog2.pop %v628
        %v678 = vmul.f32 %v677, 0.6931472
        %v679 = vlog2.pop %v629
        %v680 = vmul.f32 %v679, 0.6931472
        %v681 = vlog2.pop %v630
        %v682 = vmul.f32 %v681, 0.6931472
        %v683 = vlog2.pop %v631
        %v684 = vmul.f32 %v683, 0.6931472
        %v685 = vlog2.pop %v632
        %v686 = vmul.f32 %v685, 0.6931472
        %v687 = vlog2.pop %v633
        %v688 = vmul.f32 %v687, 0.6931472
        %v689 = vlog2.pop %v634
        %v690 = vmul.f32 %v689, 0.6931472
        %v691 = vlog2.pop %v635
        %v692 = vmul.f32 %v691, 0.6931472
        %v693 = vlog2.pop %v636
        %v694 = vmul.f32 %v693, 0.6931472
        %v695 = vlog2.pop %v637
        %v696 = vmul.f32 %v695, 0.6931472
        %v697 = vlog2.pop %v638
        %v698 = vmul.f32 %v697, 0.6931472
        %v699 = vadd.f32 %v327, %v676
        %v700 = vadd.f32 %v328, %v678
        %v701 = vadd.f32 %v329, %v680
        %v702 = vadd.f32 %v330, %v682
        %v703 = vadd.f32 %v331, %v684
        %v704 = vadd.f32 %v332, %v686
        %v705 = vadd.f32 %v333, %v688
        %v706 = vadd.f32 %v334, %v690
        %v707 = vadd.f32 %v335, %v692
        %v708 = vadd.f32 %v336, %v694
        %v709 = vadd.f32 %v337, %v696
        %v710 = vadd.f32 %v338, %v698
        %s711 = smul.u32 %s236, 96
        %s712 = scalar_lea.vmem %s192, %s711 [#allocation5]
        %v713 = vld [vmem:[%s712] sm:$0xff]
        %v714 = vld [vmem:[%s712 + $0x8] sm:$0xff]
        %v715 = vld [vmem:[%s712 + $0x10] sm:$0xff]
        %v716 = vld [vmem:[%s712 + $0x18] sm:$0xff]
        %v717 = vld [vmem:[%s712 + $0x20] sm:$0xff]
        %v718 = vld [vmem:[%s712 + $0x28] sm:$0xff]
        %v719 = vld [vmem:[%s712 + $0x30] sm:$0xff]
        %v720 = vld [vmem:[%s712 + $0x38] sm:$0xff]
        %v721 = vld [vmem:[%s712 + $0x40] sm:$0xff]
        %v722 = vld [vmem:[%s712 + $0x48] sm:$0xff]
        %v723 = vld [vmem:[%s712 + $0x50] sm:$0xff]
        %v724 = vld [vmem:[%s712 + $0x58] sm:$0xff]
        %v725 = vsub.f32 %v713, %v327
        %v726 = vsub.f32 %v714, %v328
        %v727 = vsub.f32 %v715, %v329
        %v728 = vsub.f32 %v716, %v330
        %v729 = vsub.f32 %v717, %v331
        %v730 = vsub.f32 %v718, %v332
        %v731 = vsub.f32 %v719, %v333
        %v732 = vsub.f32 %v720, %v334
        %v733 = vsub.f32 %v721, %v335
        %v734 = vsub.f32 %v722, %v336
        %v735 = vsub.f32 %v723, %v337
        %v736 = vsub.f32 %v724, %v338
        %v737 = vmul.f32 %v725, 1.442695
        %v738 = vpow.pop %v737
        %v739 = vmul.f32 %v726, 1.442695
        %v740 = vpow.pop %v739
        %v741 = vmul.f32 %v727, 1.442695
        %v742 = vpow.pop %v741
        %v743 = vmul.f32 %v728, 1.442695
        %v744 = vpow.pop %v743
        %v745 = vmul.f32 %v729, 1.442695
        %v746 = vpow.pop %v745
        %v747 = vmul.f32 %v730, 1.442695
        %v748 = vpow.pop %v747
        %v749 = vmul.f32 %v731, 1.442695
        %v750 = vpow.pop %v749
        %v751 = vmul.f32 %v732, 1.442695
        %v752 = vpow.pop %v751
        %v753 = vmul.f32 %v733, 1.442695
        %v754 = vpow.pop %v753
        %v755 = vmul.f32 %v734, 1.442695
        %v756 = vpow.pop %v755
        %v757 = vmul.f32 %v735, 1.442695
        %v758 = vpow.pop %v757
        %v759 = vmul.f32 %v736, 1.442695
        %v760 = vpow.pop %v759
        %v761 = vrcp.pop %v627
        %v762 = vrcp.pop %v628
        %v763 = vrcp.pop %v629
        %v764 = vrcp.pop %v630
        %v765 = vrcp.pop %v631
        %v766 = vrcp.pop %v632
        %v767 = vrcp.pop %v633
        %v768 = vrcp.pop %v634
        %v769 = vrcp.pop %v635
        %v770 = vrcp.pop %v636
        %v771 = vrcp.pop %v637
        %v772 = vrcp.pop %v638
        %v773 = vmul.f32 %v738, %v761
        %v774 = vmul.f32 %v740, %v762
        %v775 = vmul.f32 %v742, %v763
        %v776 = vmul.f32 %v744, %v764
        %v777 = vmul.f32 %v746, %v765
        %v778 = vmul.f32 %v748, %v766
        %v779 = vmul.f32 %v750, %v767
        %v780 = vmul.f32 %v752, %v768
        %v781 = vmul.f32 %v754, %v769
        %v782 = vmul.f32 %v756, %v770
        %v783 = vmul.f32 %v758, %v771
        %v784 = vmul.f32 %v760, %v772
        %v785 = vstv %s236
        %vm786 = vcmp.eq.s32.totalorder %v240, %v785
        %vm787 = vcmp.eq.s32.totalorder %v241, %v785
        %vm788 = vcmp.eq.s32.totalorder %v242, %v785
        %vm789 = vcmp.eq.s32.totalorder %v243, %v785
        %vm790 = vcmp.eq.s32.totalorder %v244, %v785
        %vm791 = vcmp.eq.s32.totalorder %v245, %v785
        %vm792 = vcmp.eq.s32.totalorder %v246, %v785
        %vm793 = vcmp.eq.s32.totalorder %v247, %v785
        %vm794 = vcmp.eq.s32.totalorder %v248, %v785
        %vm795 = vcmp.eq.s32.totalorder %v249, %v785
        %vm796 = vcmp.eq.s32.totalorder %v250, %v785
        %vm797 = vcmp.eq.s32.totalorder %v251, %v785
        %v798 = vsel %vm786, 1, 0
        %v799 = vsel %vm787, 1, 0
        %v800 = vsel %vm788, 1, 0
        %v801 = vsel %vm789, 1, 0
        %v802 = vsel %vm790, 1, 0
        %v803 = vsel %vm791, 1, 0
        %v804 = vsel %vm792, 1, 0
        %v805 = vsel %vm793, 1, 0
        %v806 = vsel %vm794, 1, 0
        %v807 = vsel %vm795, 1, 0
        %v808 = vsel %vm796, 1, 0
        %v809 = vsel %vm797, 1, 0
        %v810 = vcvt.s32.f32 %v798
        %v811 = vcvt.s32.f32 %v799
        %v812 = vcvt.s32.f32 %v800
        %v813 = vcvt.s32.f32 %v801
        %v814 = vcvt.s32.f32 %v802
        %v815 = vcvt.s32.f32 %v803
        %v816 = vcvt.s32.f32 %v804
        %v817 = vcvt.s32.f32 %v805
        %v818 = vcvt.s32.f32 %v806
        %v819 = vcvt.s32.f32 %v807
        %v820 = vcvt.s32.f32 %v808
        %v821 = vcvt.s32.f32 %v809
        %vm822 = vcmp.ge.s32.totalorder %v240, 0
        %vm823 = vcmp.ge.s32.totalorder %v241, 0
        %vm824 = vcmp.ge.s32.totalorder %v242, 0
        %vm825 = vcmp.ge.s32.totalorder %v243, 0
        %vm826 = vcmp.ge.s32.totalorder %v244, 0
        %vm827 = vcmp.ge.s32.totalorder %v245, 0
        %vm828 = vcmp.ge.s32.totalorder %v246, 0
        %vm829 = vcmp.ge.s32.totalorder %v247, 0
        %vm830 = vcmp.ge.s32.totalorder %v248, 0
        %vm831 = vcmp.ge.s32.totalorder %v249, 0
        %vm832 = vcmp.ge.s32.totalorder %v250, 0
        %vm833 = vcmp.ge.s32.totalorder %v251, 0
        %v834 = vsel %vm822, 1, 0
        %v835 = vsel %vm823, 1, 0
        %v836 = vsel %vm824, 1, 0
        %v837 = vsel %vm825, 1, 0
        %v838 = vsel %vm826, 1, 0
        %v839 = vsel %vm827, 1, 0
        %v840 = vsel %vm828, 1, 0
        %v841 = vsel %vm829, 1, 0
        %v842 = vsel %vm830, 1, 0
        %v843 = vsel %vm831, 1, 0
        %v844 = vsel %vm832, 1, 0
        %v845 = vsel %vm833, 1, 0
        %v846 = vcvt.s32.f32 %v834
        %v847 = vcvt.s32.f32 %v835
        %v848 = vcvt.s32.f32 %v836
        %v849 = vcvt.s32.f32 %v837
        %v850 = vcvt.s32.f32 %v838
        %v851 = vcvt.s32.f32 %v839
        %v852 = vcvt.s32.f32 %v840
        %v853 = vcvt.s32.f32 %v841
        %v854 = vcvt.s32.f32 %v842
        %v855 = vcvt.s32.f32 %v843
        %v856 = vcvt.s32.f32 %v844
        %v857 = vcvt.s32.f32 %v845
        %v858 = vmul.f32 %v699, %v846
        %v859 = vmul.f32 %v700, %v847
        %v860 = vmul.f32 %v701, %v848
        %v861 = vmul.f32 %v702, %v849
        %v862 = vmul.f32 %v703, %v850
        %v863 = vmul.f32 %v704, %v851
        %v864 = vmul.f32 %v705, %v852
        %v865 = vmul.f32 %v706, %v853
        %v866 = vmul.f32 %v707, %v854
        %v867 = vmul.f32 %v708, %v855
        %v868 = vmul.f32 %v709, %v856
        %v869 = vmul.f32 %v710, %v857
        %v870 = vmul.f32 %v773, %v846
        %v871 = vmul.f32 %v774, %v847
        %v872 = vmul.f32 %v775, %v848
        %v873 = vmul.f32 %v776, %v849
        %v874 = vmul.f32 %v777, %v850
        %v875 = vmul.f32 %v778, %v851
        %v876 = vmul.f32 %v779, %v852
        %v877 = vmul.f32 %v780, %v853
        %v878 = vmul.f32 %v781, %v854
        %v879 = vmul.f32 %v782, %v855
        %v880 = vmul.f32 %v783, %v856
        %v881 = vmul.f32 %v784, %v857
        %v882 = vld [vmem:[#allocation2] sm:$0xff]
        %v883 = vsub.f32 %v858, %v663
        %v884 = vsub.f32 %v859, %v664
        %v885 = vsub.f32 %v860, %v665
        %v886 = vsub.f32 %v861, %v666
        %v887 = vsub.f32 %v862, %v667
        %v888 = vsub.f32 %v863, %v668
        %v889 = vsub.f32 %v864, %v669
        %v890 = vsub.f32 %v865, %v670
        %v891 = vsub.f32 %v866, %v671
        %v892 = vsub.f32 %v867, %v672
        %v893 = vsub.f32 %v868, %v673
        %v894 = vsub.f32 %v869, %v674
        %v895 = vadd.f32 %v883, %v884
        %v896 = vadd.f32 %v895, %v885
        %v897 = vadd.f32 %v896, %v886
        %v898 = vadd.f32 %v897, %v887
        %v899 = vadd.f32 %v898, %v888
        %v900 = vadd.f32 %v899, %v889
        %v901 = vadd.f32 %v900, %v890
        %v902 = vadd.f32 %v901, %v891
        %v903 = vadd.f32 %v902, %v892
        %v904 = vadd.f32 %v903, %v893
        %v905 = vadd.f32 %v904, %v894
        %v906 = vadd.f32 %v882, %v905
        %907 = vst [vmem:[#allocation2] sm:$0xff] %v906
        %s908 = scalar_lea.vmem [#allocation2], 8
        %v909 = vld [vmem:[%s908] sm:$0xff]
        %v910 = vmul.f32 %v870, %v810
        %v911 = vmul.f32 %v871, %v811
        %v912 = vmul.f32 %v872, %v812
        %v913 = vmul.f32 %v873, %v813
        %v914 = vmul.f32 %v874, %v814
        %v915 = vmul.f32 %v875, %v815
        %v916 = vmul.f32 %v876, %v816
        %v917 = vmul.f32 %v877, %v817
        %v918 = vmul.f32 %v878, %v818
        %v919 = vmul.f32 %v879, %v819
        %v920 = vmul.f32 %v880, %v820
        %v921 = vmul.f32 %v881, %v821
        %v922 = vadd.f32 %v910, %v911
        %v923 = vadd.f32 %v922, %v912
        %v924 = vadd.f32 %v923, %v913
        %v925 = vadd.f32 %v924, %v914
        %v926 = vadd.f32 %v925, %v915
        %v927 = vadd.f32 %v926, %v916
        %v928 = vadd.f32 %v927, %v917
        %v929 = vadd.f32 %v928, %v918
        %v930 = vadd.f32 %v929, %v919
        %v931 = vadd.f32 %v930, %v920
        %v932 = vadd.f32 %v931, %v921
        %v933 = vadd.f32 %v909, %v932
        %934 = vst [vmem:[%s908] sm:$0xff] %v933
        %s935 = scalar_lea.vmem [#allocation2], 16
        %v936 = vld [vmem:[%s935] sm:$0xff]
        %v937 = vadd.f32 %v870, %v871
        %v938 = vadd.f32 %v937, %v872
        %v939 = vadd.f32 %v938, %v873
        %v940 = vadd.f32 %v939, %v874
        %v941 = vadd.f32 %v940, %v875
        %v942 = vadd.f32 %v941, %v876
        %v943 = vadd.f32 %v942, %v877
        %v944 = vadd.f32 %v943, %v878
        %v945 = vadd.f32 %v944, %v879
        %v946 = vadd.f32 %v945, %v880
        %v947 = vadd.f32 %v946, %v881
        %v948 = vadd.f32 %v936, %v947
        %949 = vst [vmem:[%s935] sm:$0xff] %v948
        %s950 = scalar_lea.vmem [#allocation2], 24
        %v951 = vld [vmem:[%s950] sm:$0xff]
        %v952 = vadd.f32 %v810, %v811
        %v953 = vadd.f32 %v952, %v812
        %v954 = vadd.f32 %v953, %v813
        %v955 = vadd.f32 %v954, %v814
        %v956 = vadd.f32 %v955, %v815
        %v957 = vadd.f32 %v956, %v816
        %v958 = vadd.f32 %v957, %v817
        %v959 = vadd.f32 %v958, %v818
        %v960 = vadd.f32 %v959, %v819
        %v961 = vadd.f32 %v960, %v820
        %v962 = vadd.f32 %v961, %v821
        %v963 = vadd.f32 %v951, %v962
        %964 = vst [vmem:[%s950] sm:$0xff] %v963
        // Predicated region
        $region41: #{tpu_custom_call.1} parent=27 // pred_check
          %p965 = pneg %p228
        $region42: #{tpu_custom_call.1} parent=27 // pred_check_branch
          %967 = sbr.rel (%p965) target = $region44
        $region43: #{tpu_custom_call.1} parent=27 // pred_region
          %v968 = vld [vmem:[#allocation2] sm:$0xff]
          %969 = vadd.xlane.f32.xlu0 %v968
          %v970 = vpop.xlane.xlu0 %969
          %v971 = vrot.slane %v970, 4
          %v972 = vadd.f32 %v970, %v971
          %v973 = vrot.slane %v972, 2
          %v974 = vadd.f32 %v972, %v973
          %v975 = vrot.slane %v974, 1
          %v976 = vadd.f32 %v974, %v975
          %s977 = vtos %v976
          %v978 = vrcp.pop 9216.0
          %s979 = vtos %v978
          %s980 = smul.f32 %s977, %s979
          %v981 = vld [vmem:[%s908] sm:$0xff]
          %982 = vadd.xlane.f32.xlu0 %v981
          %v983 = vpop.xlane.xlu0 %982
          %v984 = vrot.slane %v983, 4
          %v985 = vadd.f32 %v983, %v984
          %v986 = vrot.slane %v985, 2
          %v987 = vadd.f32 %v985, %v986
          %v988 = vrot.slane %v987, 1
          %v989 = vadd.f32 %v987, %v988
          %s990 = vtos %v989
          %v991 = vld [vmem:[%s935] sm:$0xff]
          %992 = vadd.xlane.f32.xlu0 %v991
          %v993 = vpop.xlane.xlu0 %992
          %v994 = vrot.slane %v993, 4
          %v995 = vadd.f32 %v993, %v994
          %v996 = vrot.slane %v995, 2
          %v997 = vadd.f32 %v995, %v996
          %v998 = vrot.slane %v997, 1
          %v999 = vadd.f32 %v997, %v998
          %s1000 = vtos %v999
          %v1001 = vld [vmem:[%s950] sm:$0xff]
          %1002 = vadd.xlane.f32.xlu0 %v1001
          %v1003 = vpop.xlane.xlu0 %1002
          %v1004 = vrot.slane %v1003, 4
          %v1005 = vadd.f32 %v1003, %v1004
          %v1006 = vrot.slane %v1005, 2
          %v1007 = vadd.f32 %v1005, %v1006
          %v1008 = vrot.slane %v1007, 1
          %v1009 = vadd.f32 %v1007, %v1008
          %s1010 = vtos %v1009
          %s1011 = sadd.f32 %s1000, %s1010
          %s1012 = smul.f32 %s990, 2.0
          %s1013 = sadd.f32 %s1012, 1e-05
          %s1014 = sadd.f32 %s1011, 1e-05
          %v1015 = vstv %s1014
          %v1016 = vrcp.pop %v1015
          %s1017 = vtos %v1016
          %s1018 = smul.f32 %s1013, %s1017
          %s1019 = ssub.f32 1.0, %s1018
          %s1020 = sadd.f32 %s980, %s1019
          %v1021 = vstv %s1020
          %1022 = vst [vmem:[%s225] sm:$0x1] %v1021
        $region44: #{tpu_custom_call.1} parent=27 // pred_fallthru
          _
        %s1023 = sand.u32 %s103, 1
        %s1024 = scalar_lea.sflag [#allocation7], %s1023
        %s1025 = sand.u32 %s103, 1
        %s1026 = scalar_lea.vmem [#allocation10], %s1025
        // Predicated region
        $region45: #{tpu_custom_call.1} parent=27 // pred_check
          %p1027 = pneg %p113
        $region46: #{tpu_custom_call.1} parent=27 // pred_check_branch
          %1029 = sbr.rel (%p1027) target = $region48
        $region47: #{tpu_custom_call.1} parent=27 // pred_region
          %s1031 = ssub.s32 16, 16
          %1032 = vsyncadd %s1024, %s1031
          %s1033 = smul.addr %s31, 16
          %s1034 = scalar_lea.hbm %s3, %s1033
          %s1036 = sshll.u32 %s1026, 4
          %s1037 = int_to_ptr.vmem [resolvable:$true] %s1036
          %1039 = dma.vmem_to_hbm [thread:$0]  %s1037, 16, %s1034, %s1024
        $region48: #{tpu_custom_call.1} parent=27 // pred_fallthru
          _
      $region28: #{tpu_custom_call.1} parent=5 // pred_fallthru
        _
      %p1040 = scmp.le.s32.totalorder 2, %s22
      // Predicated region
      $region49: #{tpu_custom_call.1} parent=5 // pred_check
        %p1041 = pneg %p1040
      $region50: #{tpu_custom_call.1} parent=5 // pred_check_branch
        %1043 = sbr.rel (%p1041) target = $region52
      $region51: #{tpu_custom_call.1} parent=5 // pred_region
        %s1044 = ssub.s32 %s22, 2
        // Predicated region
        $region53: #{tpu_custom_call.1} parent=51 // pred_check
          %p1045 = pneg %p119
        $region54: #{tpu_custom_call.1} parent=51 // pred_check_branch
          %1047 = sbr.rel (%p1045) target = $region56
        $region55: #{tpu_custom_call.1} parent=51 // pred_region
          %s1048 = sand.u32 %s104, 1
          %s1049 = scalar_lea.sflag [#allocation7], %s1048
          %s1050 = sand.u32 %s104, 1
          %s1051 = scalar_lea.vmem [#allocation10], %s1050
          %1052 = dma.done %s1049, 16
        $region56: #{tpu_custom_call.1} parent=51 // pred_fallthru
          _
      $region52: #{tpu_custom_call.1} parent=5 // pred_fallthru
        _
    $region6: #{tpu_custom_call.1} parent=1 // loop_footer
      %s26 = sadd.s32 1, %s22
    $region7: #{tpu_custom_call.1} parent=1 // loop_footer_branch
      %21 = sbr.rel target = $region3
    $region8: #{tpu_custom_call.1} parent=1 // loop_exit
      _
    %1053 = vsyncpa [#allocation6], 1
    %s1054 = scalar_lea.sflag [#allocation6], 1
    %1055 = vsyncpa %s1054, 1
    %1056 = vsyncpa [#allocation9], 1
    %s1057 = scalar_lea.sflag [#allocation9], 1
    %1058 = vsyncpa %s1057, 1
    %1059 = vsyncpa [#allocation7], 1
    %s1060 = scalar_lea.sflag [#allocation7], 1
    %1061 = vsyncpa %s1060, 1

</llo_original>
